<compile_context>
chip_gen: v7x
topology: tpu7x:2x2x1
jax: 0.10.0
libtpu: 0.0.40
codegen_flags: <defaults>
</compile_context>

<pallas_src>
import functools

import jax
import jax.numpy as jnp
from jax.experimental import pallas as pl
from jax.experimental.pallas import tpu as pltpu


# --------------------------------------------------------------------------
# Fused decoder kernel: linear_1 -> GRU (unrolled) -> output linear
# --------------------------------------------------------------------------
def _decoder_fused_kernel(B, S,
                          doc_ref, w1_ref, b1_ref,
                          wir_ref, wiz_ref, win_ref,
                          whr_ref, whz_ref, whn_ref,
                          br_ref, bz_ref, bin_ref, bhn_ref,
                          wout_ref, bout_ref,
                          out_ref, hbuf_ref):
    # doc_ref: (S*B, E), time-major rows (row = t*B + b).
    f32 = jnp.float32

    # ---- linear_1 for all positions at once: (S*B, E) @ (E, 2E) ----
    x1 = (jnp.dot(doc_ref[...], w1_ref[...], preferred_element_type=f32)
          + b1_ref[...])

    # ---- GRU input projections for ALL time steps (hoisted), one per gate ----
    # b_r / b_z already contain b_ih + b_hh for the r / z gates.
    gi_r = jnp.dot(x1, wir_ref[...], preferred_element_type=f32) + br_ref[...]
    gi_z = jnp.dot(x1, wiz_ref[...], preferred_element_type=f32) + bz_ref[...]
    gi_n = jnp.dot(x1, win_ref[...], preferred_element_type=f32) + bin_ref[...]

    whr = whr_ref[...]
    whz = whz_ref[...]
    whn = whn_ref[...]
    bhn = bhn_ref[...]
    H = whr.shape[0]

    # ---- serial recurrence (zero initial hidden), fully unrolled over t ----
    h = jnp.zeros((B, H), f32)
    for t in range(S):                       # static -> all slices/stores static
        lo = t * B
        i_r = gi_r[lo:lo + B, :]
        i_z = gi_z[lo:lo + B, :]
        i_n = gi_n[lo:lo + B, :]

        h_r = jnp.dot(h, whr, preferred_element_type=f32)
        h_z = jnp.dot(h, whz, preferred_element_type=f32)
        h_n = jnp.dot(h, whn, preferred_element_type=f32) + bhn

        r = jax.nn.sigmoid(i_r + h_r)
        z = jax.nn.sigmoid(i_z + h_z)
        n = jnp.tanh(i_n + r * h_n)
        h = (1.0 - z) * n + z * h

        # One contiguous B-row store per step, time-major (row = t*B + b).
        hbuf_ref[lo:lo + B, :] = h

    # ---- output linear over the whole hidden sequence; lane-dense store ----
    h_all = hbuf_ref[...]                                   # (S*B, H), time-major
    out_ref[...] = (jnp.dot(h_all, wout_ref[...], preferred_element_type=f32)
                    + bout_ref[...]).astype(out_ref.dtype)


# --------------------------------------------------------------------------
# Parameter construction (deterministic, synthetic)
# --------------------------------------------------------------------------
def init_decoder_params(key, emb_size, num_tags, lane_pad=128):
    E = emb_size
    H = emb_size
    s = 0.05
    ks = iter(jax.random.split(key, 20))

    def rnd(shape):
        return s * jax.random.normal(next(ks), shape, jnp.float32)

    t_pad = max(lane_pad, ((num_tags + lane_pad - 1) // lane_pad) * lane_pad)
    w_out = rnd((H, num_tags))
    b_out = rnd((1, num_tags))

    return dict(
        # linear_1: Linear(E, 2E), stored as (in, out) so the kernel does x @ W.
        w1=rnd((E, 2 * E)),
        b1=rnd((1, 2 * E)),
        # GRU input-to-hidden weights, split per gate (PyTorch order r, z, n),
        # pre-transposed to (in, out).
        w_ih_r=rnd((2 * E, H)), w_ih_z=rnd((2 * E, H)), w_ih_n=rnd((2 * E, H)),
        # GRU hidden-to-hidden weights, split per gate, pre-transposed.
        w_hh_r=rnd((H, H)), w_hh_z=rnd((H, H)), w_hh_n=rnd((H, H)),
        # Biases: r/z gates take the sum b_ih + b_hh (mathematically identical);
        # the n gate keeps b_in and b_hn separate (b_hn sits inside r * (...)).
        b_r=rnd((1, H)) + rnd((1, H)),
        b_z=rnd((1, H)) + rnd((1, H)),
        b_in=rnd((1, H)),
        b_hn=rnd((1, H)),
        # Output Linear(H, num_tags), zero-padded on the lane axis to 128 so the
        # kernel's final store is lane-dense; the wrapper slices back.
        w_out=jnp.zeros((H, t_pad), jnp.float32).at[:, :num_tags].set(w_out),
        b_out=jnp.zeros((1, t_pad), jnp.float32).at[:, :num_tags].set(b_out),
    )


# --------------------------------------------------------------------------
# Forward pass wrapper
# --------------------------------------------------------------------------
def _decoder_forward_impl(doc, hidden, enc_output, params, *, num_tags):
    # attention=False path of Decoder.forward; `hidden` / `enc_output` are
    # unused (signature parity with PyTorch; the GRU uses a zero initial state).
    del hidden, enc_output
    B, S, E = doc.shape
    H = params["w_hh_r"].shape[0]
    t_pad = params["w_out"].shape[1]

    # Time-major flatten of the tiny input (mirrors doc.permute(1, 0, 2)).
    doc_tm = jnp.transpose(doc, (1, 0, 2)).reshape(S * B, E)

    kernel = functools.partial(_decoder_fused_kernel, B, S)
    out = pl.pallas_call(
        kernel,
        out_shape=jax.ShapeDtypeStruct((S * B, t_pad), jnp.float32),
        scratch_shapes=[pltpu.VMEM((S * B, H), jnp.float32)],
    )(doc_tm,
      params["w1"], params["b1"],
      params["w_ih_r"], params["w_ih_z"], params["w_ih_n"],
      params["w_hh_r"], params["w_hh_z"], params["w_hh_n"],
      params["b_r"], params["b_z"], params["b_in"], params["b_hn"],
      params["w_out"], params["b_out"])

    # Slice off the lane padding, then permute back to batch-major (the
    # analogue of the module's trailing doc.permute(1, 0, 2)).
    out = out[:, :num_tags].reshape(S, B, num_tags)
    return jnp.transpose(out, (1, 0, 2))


decoder_forward = jax.jit(_decoder_forward_impl, static_argnames=("num_tags",))


if __name__ == "__main__":
    emb_size, num_tags = 32, 20
    B, S = 2, 8

    key = jax.random.PRNGKey(0)
    k_doc, k_hid, k_enc, k_par = jax.random.split(key, 4)

    doc = jax.random.normal(k_doc, (B, S, emb_size), jnp.float32)             # (B, S, E)
    hidden = jax.random.normal(k_hid, (1, B, emb_size), jnp.float32)          # unused
    enc_output = jax.random.normal(k_enc, (S, B, 2 * emb_size), jnp.float32)  # unused

    params = init_decoder_params(k_par, emb_size, num_tags)

    out = decoder_forward(doc, hidden, enc_output, params, num_tags=num_tags)
    out = jax.block_until_ready(out)
    assert out.shape == (B, S, num_tags), out.shape
    print("KERNEL_OK")
</pallas_src>

<mosaic_0001>
module attributes {stable_mosaic.version = 11 : i64} {
  func.func @_decoder_fused_kernel(%arg0: memref<16x32xf32, #tpu.memory_space<vmem>>, %arg1: memref<32x64xf32, #tpu.memory_space<vmem>>, %arg2: memref<1x64xf32, #tpu.memory_space<vmem>>, %arg3: memref<64x32xf32, #tpu.memory_space<vmem>>, %arg4: memref<64x32xf32, #tpu.memory_space<vmem>>, %arg5: memref<64x32xf32, #tpu.memory_space<vmem>>, %arg6: memref<32x32xf32, #tpu.memory_space<vmem>>, %arg7: memref<32x32xf32, #tpu.memory_space<vmem>>, %arg8: memref<32x32xf32, #tpu.memory_space<vmem>>, %arg9: memref<1x32xf32, #tpu.memory_space<vmem>>, %arg10: memref<1x32xf32, #tpu.memory_space<vmem>>, %arg11: memref<1x32xf32, #tpu.memory_space<vmem>>, %arg12: memref<1x32xf32, #tpu.memory_space<vmem>>, %arg13: memref<32x128xf32, #tpu.memory_space<vmem>>, %arg14: memref<1x128xf32, #tpu.memory_space<vmem>>, %arg15: memref<16x128xf32, #tpu.memory_space<vmem>>, %arg16: memref<16x32xf32, #tpu.memory_space<vmem>>) attributes {dimension_semantics = [], scalar_prefetch = 0 : i64, scratch_operands = 1 : i64, tpu.core_type = #tpu.core_type<tc>} {
    %c0 = arith.constant 0 : index
    %c0_0 = arith.constant 0 : index
    %0 = vector.load %arg0[%c0, %c0_0] : memref<16x32xf32, #tpu.memory_space<vmem>>, vector<16x32xf32>
    %c0_1 = arith.constant 0 : index
    %c0_2 = arith.constant 0 : index
    %1 = vector.load %arg1[%c0_1, %c0_2] : memref<32x64xf32, #tpu.memory_space<vmem>>, vector<32x64xf32>
    %cst = arith.constant dense<0.000000e+00> : vector<16x64xf32>
    %2 = tpu.matmul %0, %1, %cst {dimension_numbers = #tpu.dot_dimension_numbers<[1], [0], [0], [1], [0, 0, 1, 1], [], []>} : vector<16x32xf32>, vector<32x64xf32>, vector<16x64xf32> -> vector<16x64xf32>
    %c0_3 = arith.constant 0 : index
    %c0_4 = arith.constant 0 : index
    %3 = vector.load %arg2[%c0_3, %c0_4] : memref<1x64xf32, #tpu.memory_space<vmem>>, vector<1x64xf32>
    %4 = vector.broadcast %3 : vector<1x64xf32> to vector<16x64xf32>
    %5 = arith.addf %2, %4 : vector<16x64xf32>
    %c0_5 = arith.constant 0 : index
    %c0_6 = arith.constant 0 : index
    %6 = vector.load %arg3[%c0_5, %c0_6] : memref<64x32xf32, #tpu.memory_space<vmem>>, vector<64x32xf32>
    %cst_7 = arith.constant dense<0.000000e+00> : vector<16x32xf32>
    %7 = tpu.matmul %5, %6, %cst_7 {dimension_numbers = #tpu.dot_dimension_numbers<[1], [0], [0], [1], [0, 0, 1, 1], [], []>} : vector<16x64xf32>, vector<64x32xf32>, vector<16x32xf32> -> vector<16x32xf32>
    %c0_8 = arith.constant 0 : index
    %c0_9 = arith.constant 0 : index
    %8 = vector.load %arg9[%c0_8, %c0_9] : memref<1x32xf32, #tpu.memory_space<vmem>>, vector<1x32xf32>
    %9 = vector.broadcast %8 : vector<1x32xf32> to vector<16x32xf32>
    %10 = arith.addf %7, %9 : vector<16x32xf32>
    %c0_10 = arith.constant 0 : index
    %c0_11 = arith.constant 0 : index
    %11 = vector.load %arg4[%c0_10, %c0_11] : memref<64x32xf32, #tpu.memory_space<vmem>>, vector<64x32xf32>
    %cst_12 = arith.constant dense<0.000000e+00> : vector<16x32xf32>
    %12 = tpu.matmul %5, %11, %cst_12 {dimension_numbers = #tpu.dot_dimension_numbers<[1], [0], [0], [1], [0, 0, 1, 1], [], []>} : vector<16x64xf32>, vector<64x32xf32>, vector<16x32xf32> -> vector<16x32xf32>
    %c0_13 = arith.constant 0 : index
    %c0_14 = arith.constant 0 : index
    %13 = vector.load %arg10[%c0_13, %c0_14] : memref<1x32xf32, #tpu.memory_space<vmem>>, vector<1x32xf32>
    %14 = vector.broadcast %13 : vector<1x32xf32> to vector<16x32xf32>
    %15 = arith.addf %12, %14 : vector<16x32xf32>
    %c0_15 = arith.constant 0 : index
    %c0_16 = arith.constant 0 : index
    %16 = vector.load %arg5[%c0_15, %c0_16] : memref<64x32xf32, #tpu.memory_space<vmem>>, vector<64x32xf32>
    %cst_17 = arith.constant dense<0.000000e+00> : vector<16x32xf32>
    %17 = tpu.matmul %5, %16, %cst_17 {dimension_numbers = #tpu.dot_dimension_numbers<[1], [0], [0], [1], [0, 0, 1, 1], [], []>} : vector<16x64xf32>, vector<64x32xf32>, vector<16x32xf32> -> vector<16x32xf32>
    %c0_18 = arith.constant 0 : index
    %c0_19 = arith.constant 0 : index
    %18 = vector.load %arg11[%c0_18, %c0_19] : memref<1x32xf32, #tpu.memory_space<vmem>>, vector<1x32xf32>
    %19 = vector.broadcast %18 : vector<1x32xf32> to vector<16x32xf32>
    %20 = arith.addf %17, %19 : vector<16x32xf32>
    %c0_20 = arith.constant 0 : index
    %c0_21 = arith.constant 0 : index
    %21 = vector.load %arg6[%c0_20, %c0_21] : memref<32x32xf32, #tpu.memory_space<vmem>>, vector<32x32xf32>
    %c0_22 = arith.constant 0 : index
    %c0_23 = arith.constant 0 : index
    %22 = vector.load %arg7[%c0_22, %c0_23] : memref<32x32xf32, #tpu.memory_space<vmem>>, vector<32x32xf32>
    %c0_24 = arith.constant 0 : index
    %c0_25 = arith.constant 0 : index
    %23 = vector.load %arg8[%c0_24, %c0_25] : memref<32x32xf32, #tpu.memory_space<vmem>>, vector<32x32xf32>
    %c0_26 = arith.constant 0 : index
    %c0_27 = arith.constant 0 : index
    %24 = vector.load %arg12[%c0_26, %c0_27] : memref<1x32xf32, #tpu.memory_space<vmem>>, vector<1x32xf32>
    %cst_28 = arith.constant 0.000000e+00 : f32
    %25 = vector.broadcast %cst_28 : f32 to vector<2x32xf32>
    %26 = vector.extract_strided_slice %10 {offsets = [0, 0], sizes = [2, 32], strides = [1, 1]} : vector<16x32xf32> to vector<2x32xf32>
    %27 = vector.extract_strided_slice %15 {offsets = [0, 0], sizes = [2, 32], strides = [1, 1]} : vector<16x32xf32> to vector<2x32xf32>
    %28 = vector.extract_strided_slice %20 {offsets = [0, 0], sizes = [2, 32], strides = [1, 1]} : vector<16x32xf32> to vector<2x32xf32>
    %cst_29 = arith.constant dense<0.000000e+00> : vector<2x32xf32>
    %29 = tpu.matmul %25, %21, %cst_29 {dimension_numbers = #tpu.dot_dimension_numbers<[1], [0], [0], [1], [0, 0, 1, 1], [], []>} : vector<2x32xf32>, vector<32x32xf32>, vector<2x32xf32> -> vector<2x32xf32>
    %cst_30 = arith.constant dense<0.000000e+00> : vector<2x32xf32>
    %30 = tpu.matmul %25, %22, %cst_30 {dimension_numbers = #tpu.dot_dimension_numbers<[1], [0], [0], [1], [0, 0, 1, 1], [], []>} : vector<2x32xf32>, vector<32x32xf32>, vector<2x32xf32> -> vector<2x32xf32>
    %cst_31 = arith.constant dense<0.000000e+00> : vector<2x32xf32>
    %31 = tpu.matmul %25, %23, %cst_31 {dimension_numbers = #tpu.dot_dimension_numbers<[1], [0], [0], [1], [0, 0, 1, 1], [], []>} : vector<2x32xf32>, vector<32x32xf32>, vector<2x32xf32> -> vector<2x32xf32>
    %32 = vector.broadcast %24 : vector<1x32xf32> to vector<2x32xf32>
    %33 = arith.addf %31, %32 : vector<2x32xf32>
    %34 = arith.addf %26, %29 : vector<2x32xf32>
    %35 = arith.negf %34 : vector<2x32xf32>
    %36 = math.exp %35 : vector<2x32xf32>
    %cst_32 = arith.constant 1.000000e+00 : f32
    %37 = vector.broadcast %cst_32 : f32 to vector<2x32xf32>
    %38 = arith.addf %37, %36 : vector<2x32xf32>
    %39 = arith.divf %37, %38 : vector<2x32xf32>
    %40 = arith.addf %27, %30 : vector<2x32xf32>
    %41 = arith.negf %40 : vector<2x32xf32>
    %42 = math.exp %41 : vector<2x32xf32>
    %cst_33 = arith.constant 1.000000e+00 : f32
    %43 = vector.broadcast %cst_33 : f32 to vector<2x32xf32>
    %44 = arith.addf %43, %42 : vector<2x32xf32>
    %45 = arith.divf %43, %44 : vector<2x32xf32>
    %46 = arith.mulf %39, %33 : vector<2x32xf32>
    %47 = arith.addf %28, %46 : vector<2x32xf32>
    %48 = math.tanh %47 : vector<2x32xf32>
    %cst_34 = arith.constant 1.000000e+00 : f32
    %49 = vector.broadcast %cst_34 : f32 to vector<2x32xf32>
    %50 = arith.subf %49, %45 : vector<2x32xf32>
    %51 = arith.mulf %50, %48 : vector<2x32xf32>
    %52 = arith.mulf %45, %25 : vector<2x32xf32>
    %53 = arith.addf %51, %52 : vector<2x32xf32>
    %c0_35 = arith.constant 0 : index
    %c0_36 = arith.constant 0 : index
    %54 = vector.load %arg16[%c0_35, %c0_36] : memref<16x32xf32, #tpu.memory_space<vmem>>, vector<2x32xf32>
    tpu.vector_store %arg16[%c0_35, %c0_36], %53 {strides = array<i32>} : memref<16x32xf32, #tpu.memory_space<vmem>>, vector<2x32xf32>,
    %55 = vector.extract_strided_slice %10 {offsets = [2, 0], sizes = [2, 32], strides = [1, 1]} : vector<16x32xf32> to vector<2x32xf32>
    %56 = vector.extract_strided_slice %15 {offsets = [2, 0], sizes = [2, 32], strides = [1, 1]} : vector<16x32xf32> to vector<2x32xf32>
    %57 = vector.extract_strided_slice %20 {offsets = [2, 0], sizes = [2, 32], strides = [1, 1]} : vector<16x32xf32> to vector<2x32xf32>
    %cst_37 = arith.constant dense<0.000000e+00> : vector<2x32xf32>
    %58 = tpu.matmul %53, %21, %cst_37 {dimension_numbers = #tpu.dot_dimension_numbers<[1], [0], [0], [1], [0, 0, 1, 1], [], []>} : vector<2x32xf32>, vector<32x32xf32>, vector<2x32xf32> -> vector<2x32xf32>
    %cst_38 = arith.constant dense<0.000000e+00> : vector<2x32xf32>
    %59 = tpu.matmul %53, %22, %cst_38 {dimension_numbers = #tpu.dot_dimension_numbers<[1], [0], [0], [1], [0, 0, 1, 1], [], []>} : vector<2x32xf32>, vector<32x32xf32>, vector<2x32xf32> -> vector<2x32xf32>
    %cst_39 = arith.constant dense<0.000000e+00> : vector<2x32xf32>
    %60 = tpu.matmul %53, %23, %cst_39 {dimension_numbers = #tpu.dot_dimension_numbers<[1], [0], [0], [1], [0, 0, 1, 1], [], []>} : vector<2x32xf32>, vector<32x32xf32>, vector<2x32xf32> -> vector<2x32xf32>
    %61 = vector.broadcast %24 : vector<1x32xf32> to vector<2x32xf32>
    %62 = arith.addf %60, %61 : vector<2x32xf32>
    %63 = arith.addf %55, %58 : vector<2x32xf32>
    %64 = arith.negf %63 : vector<2x32xf32>
    %65 = math.exp %64 : vector<2x32xf32>
    %cst_40 = arith.constant 1.000000e+00 : f32
    %66 = vector.broadcast %cst_40 : f32 to vector<2x32xf32>
    %67 = arith.addf %66, %65 : vector<2x32xf32>
    %68 = arith.divf %66, %67 : vector<2x32xf32>
    %69 = arith.addf %56, %59 : vector<2x32xf32>
    %70 = arith.negf %69 : vector<2x32xf32>
    %71 = math.exp %70 : vector<2x32xf32>
    %cst_41 = arith.constant 1.000000e+00 : f32
    %72 = vector.broadcast %cst_41 : f32 to vector<2x32xf32>
    %73 = arith.addf %72, %71 : vector<2x32xf32>
    %74 = arith.divf %72, %73 : vector<2x32xf32>
    %75 = arith.mulf %68, %62 : vector<2x32xf32>
    %76 = arith.addf %57, %75 : vector<2x32xf32>
    %77 = math.tanh %76 : vector<2x32xf32>
    %cst_42 = arith.constant 1.000000e+00 : f32
    %78 = vector.broadcast %cst_42 : f32 to vector<2x32xf32>
    %79 = arith.subf %78, %74 : vector<2x32xf32>
    %80 = arith.mulf %79, %77 : vector<2x32xf32>
    %81 = arith.mulf %74, %53 : vector<2x32xf32>
    %82 = arith.addf %80, %81 : vector<2x32xf32>
    %c2 = arith.constant 2 : index
    %c0_43 = arith.constant 0 : index
    %83 = vector.load %arg16[%c2, %c0_43] : memref<16x32xf32, #tpu.memory_space<vmem>>, vector<2x32xf32>
    tpu.vector_store %arg16[%c2, %c0_43], %82 {strides = array<i32>} : memref<16x32xf32, #tpu.memory_space<vmem>>, vector<2x32xf32>,
    %84 = vector.extract_strided_slice %10 {offsets = [4, 0], sizes = [2, 32], strides = [1, 1]} : vector<16x32xf32> to vector<2x32xf32>
    %85 = vector.extract_strided_slice %15 {offsets = [4, 0], sizes = [2, 32], strides = [1, 1]} : vector<16x32xf32> to vector<2x32xf32>
    %86 = vector.extract_strided_slice %20 {offsets = [4, 0], sizes = [2, 32], strides = [1, 1]} : vector<16x32xf32> to vector<2x32xf32>
    %cst_44 = arith.constant dense<0.000000e+00> : vector<2x32xf32>
    %87 = tpu.matmul %82, %21, %cst_44 {dimension_numbers = #tpu.dot_dimension_numbers<[1], [0], [0], [1], [0, 0, 1, 1], [], []>} : vector<2x32xf32>, vector<32x32xf32>, vector<2x32xf32> -> vector<2x32xf32>
    %cst_45 = arith.constant dense<0.000000e+00> : vector<2x32xf32>
    %88 = tpu.matmul %82, %22, %cst_45 {dimension_numbers = #tpu.dot_dimension_numbers<[1], [0], [0], [1], [0, 0, 1, 1], [], []>} : vector<2x32xf32>, vector<32x32xf32>, vector<2x32xf32> -> vector<2x32xf32>
    %cst_46 = arith.constant dense<0.000000e+00> : vector<2x32xf32>
    %89 = tpu.matmul %82, %23, %cst_46 {dimension_numbers = #tpu.dot_dimension_numbers<[1], [0], [0], [1], [0, 0, 1, 1], [], []>} : vector<2x32xf32>, vector<32x32xf32>, vector<2x32xf32> -> vector<2x32xf32>
    %90 = vector.broadcast %24 : vector<1x32xf32> to vector<2x32xf32>
    %91 = arith.addf %89, %90 : vector<2x32xf32>
    %92 = arith.addf %84, %87 : vector<2x32xf32>
    %93 = arith.negf %92 : vector<2x32xf32>
    %94 = math.exp %93 : vector<2x32xf32>
    %cst_47 = arith.constant 1.000000e+00 : f32
    %95 = vector.broadcast %cst_47 : f32 to vector<2x32xf32>
    %96 = arith.addf %95, %94 : vector<2x32xf32>
    %97 = arith.divf %95, %96 : vector<2x32xf32>
    %98 = arith.addf %85, %88 : vector<2x32xf32>
    %99 = arith.negf %98 : vector<2x32xf32>
    %100 = math.exp %99 : vector<2x32xf32>
    %cst_48 = arith.constant 1.000000e+00 : f32
    %101 = vector.broadcast %cst_48 : f32 to vector<2x32xf32>
    %102 = arith.addf %101, %100 : vector<2x32xf32>
    %103 = arith.divf %101, %102 : vector<2x32xf32>
    %104 = arith.mulf %97, %91 : vector<2x32xf32>
    %105 = arith.addf %86, %104 : vector<2x32xf32>
    %106 = math.tanh %105 : vector<2x32xf32>
    %cst_49 = arith.constant 1.000000e+00 : f32
    %107 = vector.broadcast %cst_49 : f32 to vector<2x32xf32>
    %108 = arith.subf %107, %103 : vector<2x32xf32>
    %109 = arith.mulf %108, %106 : vector<2x32xf32>
    %110 = arith.mulf %103, %82 : vector<2x32xf32>
    %111 = arith.addf %109, %110 : vector<2x32xf32>
    %c4 = arith.constant 4 : index
    %c0_50 = arith.constant 0 : index
    %112 = vector.load %arg16[%c4, %c0_50] : memref<16x32xf32, #tpu.memory_space<vmem>>, vector<2x32xf32>
    tpu.vector_store %arg16[%c4, %c0_50], %111 {strides = array<i32>} : memref<16x32xf32, #tpu.memory_space<vmem>>, vector<2x32xf32>,
    %113 = vector.extract_strided_slice %10 {offsets = [6, 0], sizes = [2, 32], strides = [1, 1]} : vector<16x32xf32> to vector<2x32xf32>
    %114 = vector.extract_strided_slice %15 {offsets = [6, 0], sizes = [2, 32], strides = [1, 1]} : vector<16x32xf32> to vector<2x32xf32>
    %115 = vector.extract_strided_slice %20 {offsets = [6, 0], sizes = [2, 32], strides = [1, 1]} : vector<16x32xf32> to vector<2x32xf32>
    %cst_51 = arith.constant dense<0.000000e+00> : vector<2x32xf32>
    %116 = tpu.matmul %111, %21, %cst_51 {dimension_numbers = #tpu.dot_dimension_numbers<[1], [0], [0], [1], [0, 0, 1, 1], [], []>} : vector<2x32xf32>, vector<32x32xf32>, vector<2x32xf32> -> vector<2x32xf32>
    %cst_52 = arith.constant dense<0.000000e+00> : vector<2x32xf32>
    %117 = tpu.matmul %111, %22, %cst_52 {dimension_numbers = #tpu.dot_dimension_numbers<[1], [0], [0], [1], [0, 0, 1, 1], [], []>} : vector<2x32xf32>, vector<32x32xf32>, vector<2x32xf32> -> vector<2x32xf32>
    %cst_53 = arith.constant dense<0.000000e+00> : vector<2x32xf32>
    %118 = tpu.matmul %111, %23, %cst_53 {dimension_numbers = #tpu.dot_dimension_numbers<[1], [0], [0], [1], [0, 0, 1, 1], [], []>} : vector<2x32xf32>, vector<32x32xf32>, vector<2x32xf32> -> vector<2x32xf32>
    %119 = vector.broadcast %24 : vector<1x32xf32> to vector<2x32xf32>
    %120 = arith.addf %118, %119 : vector<2x32xf32>
    %121 = arith.addf %113, %116 : vector<2x32xf32>
    %122 = arith.negf %121 : vector<2x32xf32>
    %123 = math.exp %122 : vector<2x32xf32>
    %cst_54 = arith.constant 1.000000e+00 : f32
    %124 = vector.broadcast %cst_54 : f32 to vector<2x32xf32>
    %125 = arith.addf %124, %123 : vector<2x32xf32>
    %126 = arith.divf %124, %125 : vector<2x32xf32>
    %127 = arith.addf %114, %117 : vector<2x32xf32>
    %128 = arith.negf %127 : vector<2x32xf32>
    %129 = math.exp %128 : vector<2x32xf32>
    %cst_55 = arith.constant 1.000000e+00 : f32
    %130 = vector.broadcast %cst_55 : f32 to vector<2x32xf32>
    %131 = arith.addf %130, %129 : vector<2x32xf32>
    %132 = arith.divf %130, %131 : vector<2x32xf32>
    %133 = arith.mulf %126, %120 : vector<2x32xf32>
    %134 = arith.addf %115, %133 : vector<2x32xf32>
    %135 = math.tanh %134 : vector<2x32xf32>
    %cst_56 = arith.constant 1.000000e+00 : f32
    %136 = vector.broadcast %cst_56 : f32 to vector<2x32xf32>
    %137 = arith.subf %136, %132 : vector<2x32xf32>
    %138 = arith.mulf %137, %135 : vector<2x32xf32>
    %139 = arith.mulf %132, %111 : vector<2x32xf32>
    %140 = arith.addf %138, %139 : vector<2x32xf32>
    %c6 = arith.constant 6 : index
    %c0_57 = arith.constant 0 : index
    %141 = vector.load %arg16[%c6, %c0_57] : memref<16x32xf32, #tpu.memory_space<vmem>>, vector<2x32xf32>
    tpu.vector_store %arg16[%c6, %c0_57], %140 {strides = array<i32>} : memref<16x32xf32, #tpu.memory_space<vmem>>, vector<2x32xf32>,
    %142 = vector.extract_strided_slice %10 {offsets = [8, 0], sizes = [2, 32], strides = [1, 1]} : vector<16x32xf32> to vector<2x32xf32>
    %143 = vector.extract_strided_slice %15 {offsets = [8, 0], sizes = [2, 32], strides = [1, 1]} : vector<16x32xf32> to vector<2x32xf32>
    %144 = vector.extract_strided_slice %20 {offsets = [8, 0], sizes = [2, 32], strides = [1, 1]} : vector<16x32xf32> to vector<2x32xf32>
    %cst_58 = arith.constant dense<0.000000e+00> : vector<2x32xf32>
    %145 = tpu.matmul %140, %21, %cst_58 {dimension_numbers = #tpu.dot_dimension_numbers<[1], [0], [0], [1], [0, 0, 1, 1], [], []>} : vector<2x32xf32>, vector<32x32xf32>, vector<2x32xf32> -> vector<2x32xf32>
    %cst_59 = arith.constant dense<0.000000e+00> : vector<2x32xf32>
    %146 = tpu.matmul %140, %22, %cst_59 {dimension_numbers = #tpu.dot_dimension_numbers<[1], [0], [0], [1], [0, 0, 1, 1], [], []>} : vector<2x32xf32>, vector<32x32xf32>, vector<2x32xf32> -> vector<2x32xf32>
    %cst_60 = arith.constant dense<0.000000e+00> : vector<2x32xf32>
    %147 = tpu.matmul %140, %23, %cst_60 {dimension_numbers = #tpu.dot_dimension_numbers<[1], [0], [0], [1], [0, 0, 1, 1], [], []>} : vector<2x32xf32>, vector<32x32xf32>, vector<2x32xf32> -> vector<2x32xf32>
    %148 = vector.broadcast %24 : vector<1x32xf32> to vector<2x32xf32>
    %149 = arith.addf %147, %148 : vector<2x32xf32>
    %150 = arith.addf %142, %145 : vector<2x32xf32>
    %151 = arith.negf %150 : vector<2x32xf32>
    %152 = math.exp %151 : vector<2x32xf32>
    %cst_61 = arith.constant 1.000000e+00 : f32
    %153 = vector.broadcast %cst_61 : f32 to vector<2x32xf32>
    %154 = arith.addf %153, %152 : vector<2x32xf32>
    %155 = arith.divf %153, %154 : vector<2x32xf32>
    %156 = arith.addf %143, %146 : vector<2x32xf32>
    %157 = arith.negf %156 : vector<2x32xf32>
    %158 = math.exp %157 : vector<2x32xf32>
    %cst_62 = arith.constant 1.000000e+00 : f32
    %159 = vector.broadcast %cst_62 : f32 to vector<2x32xf32>
    %160 = arith.addf %159, %158 : vector<2x32xf32>
    %161 = arith.divf %159, %160 : vector<2x32xf32>
    %162 = arith.mulf %155, %149 : vector<2x32xf32>
    %163 = arith.addf %144, %162 : vector<2x32xf32>
    %164 = math.tanh %163 : vector<2x32xf32>
    %cst_63 = arith.constant 1.000000e+00 : f32
    %165 = vector.broadcast %cst_63 : f32 to vector<2x32xf32>
    %166 = arith.subf %165, %161 : vector<2x32xf32>
    %167 = arith.mulf %166, %164 : vector<2x32xf32>
    %168 = arith.mulf %161, %140 : vector<2x32xf32>
    %169 = arith.addf %167, %168 : vector<2x32xf32>
    %c8 = arith.constant 8 : index
    %c0_64 = arith.constant 0 : index
    %170 = vector.load %arg16[%c8, %c0_64] : memref<16x32xf32, #tpu.memory_space<vmem>>, vector<2x32xf32>
    tpu.vector_store %arg16[%c8, %c0_64], %169 {strides = array<i32>} : memref<16x32xf32, #tpu.memory_space<vmem>>, vector<2x32xf32>,
    %171 = vector.extract_strided_slice %10 {offsets = [10, 0], sizes = [2, 32], strides = [1, 1]} : vector<16x32xf32> to vector<2x32xf32>
    %172 = vector.extract_strided_slice %15 {offsets = [10, 0], sizes = [2, 32], strides = [1, 1]} : vector<16x32xf32> to vector<2x32xf32>
    %173 = vector.extract_strided_slice %20 {offsets = [10, 0], sizes = [2, 32], strides = [1, 1]} : vector<16x32xf32> to vector<2x32xf32>
    %cst_65 = arith.constant dense<0.000000e+00> : vector<2x32xf32>
    %174 = tpu.matmul %169, %21, %cst_65 {dimension_numbers = #tpu.dot_dimension_numbers<[1], [0], [0], [1], [0, 0, 1, 1], [], []>} : vector<2x32xf32>, vector<32x32xf32>, vector<2x32xf32> -> vector<2x32xf32>
    %cst_66 = arith.constant dense<0.000000e+00> : vector<2x32xf32>
    %175 = tpu.matmul %169, %22, %cst_66 {dimension_numbers = #tpu.dot_dimension_numbers<[1], [0], [0], [1], [0, 0, 1, 1], [], []>} : vector<2x32xf32>, vector<32x32xf32>, vector<2x32xf32> -> vector<2x32xf32>
    %cst_67 = arith.constant dense<0.000000e+00> : vector<2x32xf32>
    %176 = tpu.matmul %169, %23, %cst_67 {dimension_numbers = #tpu.dot_dimension_numbers<[1], [0], [0], [1], [0, 0, 1, 1], [], []>} : vector<2x32xf32>, vector<32x32xf32>, vector<2x32xf32> -> vector<2x32xf32>
    %177 = vector.broadcast %24 : vector<1x32xf32> to vector<2x32xf32>
    %178 = arith.addf %176, %177 : vector<2x32xf32>
    %179 = arith.addf %171, %174 : vector<2x32xf32>
    %180 = arith.negf %179 : vector<2x32xf32>
    %181 = math.exp %180 : vector<2x32xf32>
    %cst_68 = arith.constant 1.000000e+00 : f32
    %182 = vector.broadcast %cst_68 : f32 to vector<2x32xf32>
    %183 = arith.addf %182, %181 : vector<2x32xf32>
    %184 = arith.divf %182, %183 : vector<2x32xf32>
    %185 = arith.addf %172, %175 : vector<2x32xf32>
    %186 = arith.negf %185 : vector<2x32xf32>
    %187 = math.exp %186 : vector<2x32xf32>
    %cst_69 = arith.constant 1.000000e+00 : f32
    %188 = vector.broadcast %cst_69 : f32 to vector<2x32xf32>
    %189 = arith.addf %188, %187 : vector<2x32xf32>
    %190 = arith.divf %188, %189 : vector<2x32xf32>
    %191 = arith.mulf %184, %178 : vector<2x32xf32>
    %192 = arith.addf %173, %191 : vector<2x32xf32>
    %193 = math.tanh %192 : vector<2x32xf32>
    %cst_70 = arith.constant 1.000000e+00 : f32
    %194 = vector.broadcast %cst_70 : f32 to vector<2x32xf32>
    %195 = arith.subf %194, %190 : vector<2x32xf32>
    %196 = arith.mulf %195, %193 : vector<2x32xf32>
    %197 = arith.mulf %190, %169 : vector<2x32xf32>
    %198 = arith.addf %196, %197 : vector<2x32xf32>
    %c10 = arith.constant 10 : index
    %c0_71 = arith.constant 0 : index
    %199 = vector.load %arg16[%c10, %c0_71] : memref<16x32xf32, #tpu.memory_space<vmem>>, vector<2x32xf32>
    tpu.vector_store %arg16[%c10, %c0_71], %198 {strides = array<i32>} : memref<16x32xf32, #tpu.memory_space<vmem>>, vector<2x32xf32>,
    %200 = vector.extract_strided_slice %10 {offsets = [12, 0], sizes = [2, 32], strides = [1, 1]} : vector<16x32xf32> to vector<2x32xf32>
    %201 = vector.extract_strided_slice %15 {offsets = [12, 0], sizes = [2, 32], strides = [1, 1]} : vector<16x32xf32> to vector<2x32xf32>
    %202 = vector.extract_strided_slice %20 {offsets = [12, 0], sizes = [2, 32], strides = [1, 1]} : vector<16x32xf32> to vector<2x32xf32>
    %cst_72 = arith.constant dense<0.000000e+00> : vector<2x32xf32>
    %203 = tpu.matmul %198, %21, %cst_72 {dimension_numbers = #tpu.dot_dimension_numbers<[1], [0], [0], [1], [0, 0, 1, 1], [], []>} : vector<2x32xf32>, vector<32x32xf32>, vector<2x32xf32> -> vector<2x32xf32>
    %cst_73 = arith.constant dense<0.000000e+00> : vector<2x32xf32>
    %204 = tpu.matmul %198, %22, %cst_73 {dimension_numbers = #tpu.dot_dimension_numbers<[1], [0], [0], [1], [0, 0, 1, 1], [], []>} : vector<2x32xf32>, vector<32x32xf32>, vector<2x32xf32> -> vector<2x32xf32>
    %cst_74 = arith.constant dense<0.000000e+00> : vector<2x32xf32>
    %205 = tpu.matmul %198, %23, %cst_74 {dimension_numbers = #tpu.dot_dimension_numbers<[1], [0], [0], [1], [0, 0, 1, 1], [], []>} : vector<2x32xf32>, vector<32x32xf32>, vector<2x32xf32> -> vector<2x32xf32>
    %206 = vector.broadcast %24 : vector<1x32xf32> to vector<2x32xf32>
    %207 = arith.addf %205, %206 : vector<2x32xf32>
    %208 = arith.addf %200, %203 : vector<2x32xf32>
    %209 = arith.negf %208 : vector<2x32xf32>
    %210 = math.exp %209 : vector<2x32xf32>
    %cst_75 = arith.constant 1.000000e+00 : f32
    %211 = vector.broadcast %cst_75 : f32 to vector<2x32xf32>
    %212 = arith.addf %211, %210 : vector<2x32xf32>
    %213 = arith.divf %211, %212 : vector<2x32xf32>
    %214 = arith.addf %201, %204 : vector<2x32xf32>
    %215 = arith.negf %214 : vector<2x32xf32>
    %216 = math.exp %215 : vector<2x32xf32>
    %cst_76 = arith.constant 1.000000e+00 : f32
    %217 = vector.broadcast %cst_76 : f32 to vector<2x32xf32>
    %218 = arith.addf %217, %216 : vector<2x32xf32>
    %219 = arith.divf %217, %218 : vector<2x32xf32>
    %220 = arith.mulf %213, %207 : vector<2x32xf32>
    %221 = arith.addf %202, %220 : vector<2x32xf32>
    %222 = math.tanh %221 : vector<2x32xf32>
    %cst_77 = arith.constant 1.000000e+00 : f32
    %223 = vector.broadcast %cst_77 : f32 to vector<2x32xf32>
    %224 = arith.subf %223, %219 : vector<2x32xf32>
    %225 = arith.mulf %224, %222 : vector<2x32xf32>
    %226 = arith.mulf %219, %198 : vector<2x32xf32>
    %227 = arith.addf %225, %226 : vector<2x32xf32>
    %c12 = arith.constant 12 : index
    %c0_78 = arith.constant 0 : index
    %228 = vector.load %arg16[%c12, %c0_78] : memref<16x32xf32, #tpu.memory_space<vmem>>, vector<2x32xf32>
    tpu.vector_store %arg16[%c12, %c0_78], %227 {strides = array<i32>} : memref<16x32xf32, #tpu.memory_space<vmem>>, vector<2x32xf32>,
    %229 = vector.extract_strided_slice %10 {offsets = [14, 0], sizes = [2, 32], strides = [1, 1]} : vector<16x32xf32> to vector<2x32xf32>
    %230 = vector.extract_strided_slice %15 {offsets = [14, 0], sizes = [2, 32], strides = [1, 1]} : vector<16x32xf32> to vector<2x32xf32>
    %231 = vector.extract_strided_slice %20 {offsets = [14, 0], sizes = [2, 32], strides = [1, 1]} : vector<16x32xf32> to vector<2x32xf32>
    %cst_79 = arith.constant dense<0.000000e+00> : vector<2x32xf32>
    %232 = tpu.matmul %227, %21, %cst_79 {dimension_numbers = #tpu.dot_dimension_numbers<[1], [0], [0], [1], [0, 0, 1, 1], [], []>} : vector<2x32xf32>, vector<32x32xf32>, vector<2x32xf32> -> vector<2x32xf32>
    %cst_80 = arith.constant dense<0.000000e+00> : vector<2x32xf32>
    %233 = tpu.matmul %227, %22, %cst_80 {dimension_numbers = #tpu.dot_dimension_numbers<[1], [0], [0], [1], [0, 0, 1, 1], [], []>} : vector<2x32xf32>, vector<32x32xf32>, vector<2x32xf32> -> vector<2x32xf32>
    %cst_81 = arith.constant dense<0.000000e+00> : vector<2x32xf32>
    %234 = tpu.matmul %227, %23, %cst_81 {dimension_numbers = #tpu.dot_dimension_numbers<[1], [0], [0], [1], [0, 0, 1, 1], [], []>} : vector<2x32xf32>, vector<32x32xf32>, vector<2x32xf32> -> vector<2x32xf32>
    %235 = vector.broadcast %24 : vector<1x32xf32> to vector<2x32xf32>
    %236 = arith.addf %234, %235 : vector<2x32xf32>
    %237 = arith.addf %229, %232 : vector<2x32xf32>
    %238 = arith.negf %237 : vector<2x32xf32>
    %239 = math.exp %238 : vector<2x32xf32>
    %cst_82 = arith.constant 1.000000e+00 : f32
    %240 = vector.broadcast %cst_82 : f32 to vector<2x32xf32>
    %241 = arith.addf %240, %239 : vector<2x32xf32>
    %242 = arith.divf %240, %241 : vector<2x32xf32>
    %243 = arith.addf %230, %233 : vector<2x32xf32>
    %244 = arith.negf %243 : vector<2x32xf32>
    %245 = math.exp %244 : vector<2x32xf32>
    %cst_83 = arith.constant 1.000000e+00 : f32
    %246 = vector.broadcast %cst_83 : f32 to vector<2x32xf32>
    %247 = arith.addf %246, %245 : vector<2x32xf32>
    %248 = arith.divf %246, %247 : vector<2x32xf32>
    %249 = arith.mulf %242, %236 : vector<2x32xf32>
    %250 = arith.addf %231, %249 : vector<2x32xf32>
    %251 = math.tanh %250 : vector<2x32xf32>
    %cst_84 = arith.constant 1.000000e+00 : f32
    %252 = vector.broadcast %cst_84 : f32 to vector<2x32xf32>
    %253 = arith.subf %252, %248 : vector<2x32xf32>
    %254 = arith.mulf %253, %251 : vector<2x32xf32>
    %255 = arith.mulf %248, %227 : vector<2x32xf32>
    %256 = arith.addf %254, %255 : vector<2x32xf32>
    %c14 = arith.constant 14 : index
    %c0_85 = arith.constant 0 : index
    %257 = vector.load %arg16[%c14, %c0_85] : memref<16x32xf32, #tpu.memory_space<vmem>>, vector<2x32xf32>
    tpu.vector_store %arg16[%c14, %c0_85], %256 {strides = array<i32>} : memref<16x32xf32, #tpu.memory_space<vmem>>, vector<2x32xf32>,
    %c0_86 = arith.constant 0 : index
    %c0_87 = arith.constant 0 : index
    %258 = vector.load %arg16[%c0_86, %c0_87] : memref<16x32xf32, #tpu.memory_space<vmem>>, vector<16x32xf32>
    %c0_88 = arith.constant 0 : index
    %c0_89 = arith.constant 0 : index
    %259 = vector.load %arg13[%c0_88, %c0_89] : memref<32x128xf32, #tpu.memory_space<vmem>>, vector<32x128xf32>
    %cst_90 = arith.constant dense<0.000000e+00> : vector<16x128xf32>
    %260 = tpu.matmul %258, %259, %cst_90 {dimension_numbers = #tpu.dot_dimension_numbers<[1], [0], [0], [1], [0, 0, 1, 1], [], []>} : vector<16x32xf32>, vector<32x128xf32>, vector<16x128xf32> -> vector<16x128xf32>
    %c0_91 = arith.constant 0 : index
    %c0_92 = arith.constant 0 : index
    %261 = vector.load %arg14[%c0_91, %c0_92] : memref<1x128xf32, #tpu.memory_space<vmem>>, vector<1x128xf32>
    %262 = vector.broadcast %261 : vector<1x128xf32> to vector<16x128xf32>
    %263 = arith.addf %260, %262 : vector<16x128xf32>
    %c0_93 = arith.constant 0 : index
    %c0_94 = arith.constant 0 : index
    %264 = vector.load %arg15[%c0_93, %c0_94] : memref<16x128xf32, #tpu.memory_space<vmem>>, vector<16x128xf32>
    tpu.vector_store %arg15[%c0_93, %c0_94], %263 {strides = array<i32>} : memref<16x128xf32, #tpu.memory_space<vmem>>, vector<16x128xf32>,
    return
  }
}

</mosaic_0001>

<llo_original>
// kernel: _decoder_forward_impl.1
$region0: #{_decoder_forward_impl.1}
  #allocation0 [shape = 'u32[]', space=smem, size = 0x4, offset = 0x4, fixed_abs, tag = 'smem constant byte address 0x4 - core index']
  #allocation1 [shape = 'u32[144,128]{1,0:T(1,128)}', space=vmem, size = 0x12000, scoped, tag = 'internal scratch']
  #allocation2 [shape = 'f32[16,32]{1,0:T(8,128)}', space=vmem, size = 0x2000, scoped, tag = 'scratch operand']
  %s0 = inlined_call_operand.vmem [shape: f32[16,32], index: 0, kind: input, shape index: {}]
  %s1 = inlined_call_operand.vmem [shape: f32[32,64], index: 1, kind: input, shape index: {}]
  %s2 = inlined_call_operand.vmem [shape: f32[1,64], index: 2, kind: input, shape index: {}]
  %s3 = inlined_call_operand.vmem [shape: f32[64,32], index: 3, kind: input, shape index: {}]
  %s4 = inlined_call_operand.vmem [shape: f32[64,32], index: 4, kind: input, shape index: {}]
  %s5 = inlined_call_operand.vmem [shape: f32[64,32], index: 5, kind: input, shape index: {}]
  %s6 = inlined_call_operand.vmem [shape: f32[32,32], index: 6, kind: input, shape index: {}]
  %s7 = inlined_call_operand.vmem [shape: f32[32,32], index: 7, kind: input, shape index: {}]
  %s8 = inlined_call_operand.vmem [shape: f32[32,32], index: 8, kind: input, shape index: {}]
  %s9 = inlined_call_operand.vmem [shape: f32[1,32], index: 9, kind: input, shape index: {}]
  %s10 = inlined_call_operand.vmem [shape: f32[1,32], index: 10, kind: input, shape index: {}]
  %s11 = inlined_call_operand.vmem [shape: f32[1,32], index: 11, kind: input, shape index: {}]
  %s12 = inlined_call_operand.vmem [shape: f32[1,32], index: 12, kind: input, shape index: {}]
  %s13 = inlined_call_operand.vmem [shape: f32[32,128], index: 13, kind: input, shape index: {}]
  %s14 = inlined_call_operand.vmem [shape: f32[1,128], index: 14, kind: input, shape index: {}]
  %s15 = inlined_call_operand.vmem [shape: f32[16,128], index: 15, kind: output, shape index: {}]
  %s16 = sld [smem:[#allocation0]]
  $region70: #{_decoder_forward_impl.1} parent=0
    _
  %s18 = ssub.s32 1, %s16
  %s19 = scalar_select 0, %s18, %s16
  // Predicated region
  $region2: #{_decoder_forward_impl.1} parent=0 // pred_check
    _
  $region3: #{_decoder_forward_impl.1} parent=0 // pred_check_branch
    %21 = sbr.rel (0) target = $region5
  $region4: #{_decoder_forward_impl.1} parent=0 // pred_region
    _
  $region5: #{_decoder_forward_impl.1} parent=0 // pred_fallthru
    _
  // Predicated region
  $region6: #{_decoder_forward_impl.1} parent=0 // pred_check
    _
  $region7: #{_decoder_forward_impl.1} parent=0 // pred_check_branch
    %23 = sbr.rel (0) target = $region9
  $region8: #{_decoder_forward_impl.1} parent=0 // pred_region
    _
  $region9: #{_decoder_forward_impl.1} parent=0 // pred_fallthru
    _
  // Predicated region
  $region10: #{_decoder_forward_impl.1} parent=0 // pred_check
    _
  $region11: #{_decoder_forward_impl.1} parent=0 // pred_check_branch
    %25 = sbr.rel (0) target = $region13
  $region12: #{_decoder_forward_impl.1} parent=0 // pred_region
    _
  $region13: #{_decoder_forward_impl.1} parent=0 // pred_fallthru
    _
  // Predicated region
  $region14: #{_decoder_forward_impl.1} parent=0 // pred_check
    _
  $region15: #{_decoder_forward_impl.1} parent=0 // pred_check_branch
    %27 = sbr.rel (0) target = $region17
  $region16: #{_decoder_forward_impl.1} parent=0 // pred_region
    _
  $region17: #{_decoder_forward_impl.1} parent=0 // pred_fallthru
    _
  // Predicated region
  $region18: #{_decoder_forward_impl.1} parent=0 // pred_check
    _
  $region19: #{_decoder_forward_impl.1} parent=0 // pred_check_branch
    %29 = sbr.rel (0) target = $region21
  $region20: #{_decoder_forward_impl.1} parent=0 // pred_region
    _
  $region21: #{_decoder_forward_impl.1} parent=0 // pred_fallthru
    _
  // Predicated region
  $region22: #{_decoder_forward_impl.1} parent=0 // pred_check
    _
  $region23: #{_decoder_forward_impl.1} parent=0 // pred_check_branch
    %31 = sbr.rel (0) target = $region25
  $region24: #{_decoder_forward_impl.1} parent=0 // pred_region
    _
  $region25: #{_decoder_forward_impl.1} parent=0 // pred_fallthru
    _
  // Predicated region
  $region26: #{_decoder_forward_impl.1} parent=0 // pred_check
    _
  $region27: #{_decoder_forward_impl.1} parent=0 // pred_check_branch
    %33 = sbr.rel (0) target = $region29
  $region28: #{_decoder_forward_impl.1} parent=0 // pred_region
    _
  $region29: #{_decoder_forward_impl.1} parent=0 // pred_fallthru
    _
  // Predicated region
  $region30: #{_decoder_forward_impl.1} parent=0 // pred_check
    _
  $region31: #{_decoder_forward_impl.1} parent=0 // pred_check_branch
    %35 = sbr.rel (0) target = $region33
  $region32: #{_decoder_forward_impl.1} parent=0 // pred_region
    _
  $region33: #{_decoder_forward_impl.1} parent=0 // pred_fallthru
    _
  // Predicated region
  $region34: #{_decoder_forward_impl.1} parent=0 // pred_check
    _
  $region35: #{_decoder_forward_impl.1} parent=0 // pred_check_branch
    %37 = sbr.rel (0) target = $region37
  $region36: #{_decoder_forward_impl.1} parent=0 // pred_region
    _
  $region37: #{_decoder_forward_impl.1} parent=0 // pred_fallthru
    _
  // Predicated region
  $region38: #{_decoder_forward_impl.1} parent=0 // pred_check
    _
  $region39: #{_decoder_forward_impl.1} parent=0 // pred_check_branch
    %39 = sbr.rel (0) target = $region41
  $region40: #{_decoder_forward_impl.1} parent=0 // pred_region
    _
  $region41: #{_decoder_forward_impl.1} parent=0 // pred_fallthru
    _
  // Predicated region
  $region42: #{_decoder_forward_impl.1} parent=0 // pred_check
    _
  $region43: #{_decoder_forward_impl.1} parent=0 // pred_check_branch
    %41 = sbr.rel (0) target = $region45
  $region44: #{_decoder_forward_impl.1} parent=0 // pred_region
    _
  $region45: #{_decoder_forward_impl.1} parent=0 // pred_fallthru
    _
  // Predicated region
  $region46: #{_decoder_forward_impl.1} parent=0 // pred_check
    _
  $region47: #{_decoder_forward_impl.1} parent=0 // pred_check_branch
    %43 = sbr.rel (0) target = $region49
  $region48: #{_decoder_forward_impl.1} parent=0 // pred_region
    _
  $region49: #{_decoder_forward_impl.1} parent=0 // pred_fallthru
    _
  // Predicated region
  $region50: #{_decoder_forward_impl.1} parent=0 // pred_check
    _
  $region51: #{_decoder_forward_impl.1} parent=0 // pred_check_branch
    %45 = sbr.rel (0) target = $region53
  $region52: #{_decoder_forward_impl.1} parent=0 // pred_region
    _
  $region53: #{_decoder_forward_impl.1} parent=0 // pred_fallthru
    _
  // Predicated region
  $region54: #{_decoder_forward_impl.1} parent=0 // pred_check
    _
  $region55: #{_decoder_forward_impl.1} parent=0 // pred_check_branch
    %47 = sbr.rel (0) target = $region57
  $region56: #{_decoder_forward_impl.1} parent=0 // pred_region
    _
  $region57: #{_decoder_forward_impl.1} parent=0 // pred_fallthru
    _
  // Predicated region
  $region58: #{_decoder_forward_impl.1} parent=0 // pred_check
    _
  $region59: #{_decoder_forward_impl.1} parent=0 // pred_check_branch
    %49 = sbr.rel (0) target = $region61
  $region60: #{_decoder_forward_impl.1} parent=0 // pred_region
    _
  $region61: #{_decoder_forward_impl.1} parent=0 // pred_fallthru
    _
  %v50 = vld [vmem:[%s0] sm:$0xff]
  %v51 = vld [vmem:[%s0 + $0x8] sm:$0xff]
  %v52 = vld [vmem:[%s1] sm:$0xff]
  %v53 = vld [vmem:[%s1 + $0x8] sm:$0xff]
  %v54 = vld [vmem:[%s1 + $0x10] sm:$0xff]
  %v55 = vld [vmem:[%s1 + $0x18] sm:$0xff]
  %v56 = vld [vmem:[%s2] sm:$0x1]
  %v58 = vlaneseq
  %v59 = vshrl.u32 %v58, 7
  %v60 = vsub.s32 0, %v59
  %v61 = vrot.slane %v56, %v60
  %vm63 = vcmask 261120
  %v65 = vsel %vm63, %v50, 0
  %v68 = vsel %vm63, %v51, 0
  %70 = vmatprep.subr.mxu0 0.0
  %71 = vmatpush1.msra.mxu0 %v52
  %72 = vmatprep.subr.mxu0 0.0
  %73 = vmatpush1.msra.mxu0 %v53
  %74 = vmatprep.subr.mxu0 0.0
  %75 = vmatpush1.msra.mxu0 %v54
  %76 = vmatprep.subr.mxu0 0.0
  %77 = vmatpush1.msra.mxu0 %v55
  %78 = vmatprep.subr.mxu0 0.0
  %79 = vmatpush1.msra.mxu0 0.0
  %80 = vmatprep.subr.mxu0 0.0
  %81 = vmatpush1.msra.mxu0 0.0
  %82 = vmatprep.subr.mxu0 0.0
  %83 = vmatpush1.msra.mxu0 0.0
  %84 = vmatprep.subr.mxu0 0.0
  %85 = vmatpush1.msra.mxu0 0.0
  %86 = vmatprep.subr.mxu0 0.0
  %87 = vmatpush1.msra.mxu0 0.0
  %88 = vmatprep.subr.mxu0 0.0
  %89 = vmatpush1.msra.mxu0 0.0
  %90 = vmatprep.subr.mxu0 0.0
  %91 = vmatpush1.msra.mxu0 0.0
  %92 = vmatprep.subr.mxu0 0.0
  %93 = vmatpush1.msra.mxu0 0.0
  %94 = vmatprep.subr.mxu0 0.0
  %95 = vmatpush1.msra.mxu0 0.0
  %96 = vmatprep.subr.mxu0 0.0
  %97 = vmatpush1.msra.mxu0 0.0
  %98 = vmatprep.subr.mxu0 0.0
  %99 = vmatpush1.msra.mxu0 0.0
  %100 = vmatprep.subr.mxu0 0.0
  %101 = vmatpush1.msra.mxu0 0.0
  %102 = vmatprep.subr.mxu0 0.0
  %103 = vmatpush1.msra.mxu0 0.0
  %104 = vmatprep.subr.mxu0 0.0
  %105 = vmatpush1.msra.mxu0 0.0
  %106 = vmatprep.subr.mxu0 0.0
  %107 = vmatpush1.msra.mxu0 0.0
  %108 = vmatprep.subr.mxu0 0.0
  %109 = vmatpush1.msra.mxu0 0.0
  %110 = vmatprep.subr.mxu0 0.0
  %111 = vmatpush1.msra.mxu0 0.0
  %112 = vmatprep.subr.mxu0 0.0
  %113 = vmatpush1.msra.mxu0 0.0
  %114 = vmatprep.subr.mxu0 0.0
  %115 = vmatpush1.msra.mxu0 0.0
  %116 = vmatprep.subr.mxu0 0.0
  %117 = vmatpush1.msra.mxu0 0.0
  %118 = vmatprep.subr.mxu0 0.0
  %119 = vmatpush1.msra.mxu0 0.0
  %120 = vmatprep.subr.mxu0 0.0
  %121 = vmatpush1.msra.mxu0 0.0
  %122 = vmatprep.subr.mxu0 0.0
  %123 = vmatpush1.msra.mxu0 0.0
  %124 = vmatprep.subr.mxu0 0.0
  %125 = vmatpush1.msra.mxu0 0.0
  %126 = vmatprep.subr.mxu0 0.0
  %127 = vmatpush1.msra.mxu0 0.0
  %128 = vmatprep.subr.mxu0 0.0
  %129 = vmatpush1.msra.mxu0 0.0
  %130 = vmatprep.subr.mxu0 0.0
  %131 = vmatpush1.msra.mxu0 0.0
  %132 = vmatprep.subr.mxu0 0.0
  %133 = vmatpush1.msra.mxu0 0.0
  %134 = vmatprep.mubr.f32.mxu0 0.0
  %135 = vmatmul.mubr.f32.gmra.mrb[0].mxu0 %v65
  %v136 = vpop.f32.mrb[0].mxu0
  %v137 = vadd.f32 %v61, %v136
  %v138 = vpop.f32.mrb[0].mxu0
  %139 = vmatprep.mubr.f32.mxu0 0.0
  %140 = vmatmul.mubr.f32.gmra.mrb[0].mxu0 %v68
  %v141 = vpop.f32.mrb[0].mxu0
  %v142 = vadd.f32 %v61, %v141
  %v143 = vpop.f32.mrb[0].mxu0
  %144 = vdwg.mxu0
  %v145 = vld [vmem:[%s3] sm:$0xff]
  %v146 = vld [vmem:[%s3 + $0x8] sm:$0xff]
  %v147 = vld [vmem:[%s3 + $0x10] sm:$0xff]
  %v148 = vld [vmem:[%s3 + $0x18] sm:$0xff]
  %v149 = vld [vmem:[%s3 + $0x20] sm:$0xff]
  %v150 = vld [vmem:[%s3 + $0x28] sm:$0xff]
  %v151 = vld [vmem:[%s3 + $0x30] sm:$0xff]
  %v152 = vld [vmem:[%s3 + $0x38] sm:$0xff]
  %v153 = vld [vmem:[%s9] sm:$0x1]
  %v155 = vlaneseq
  %v156 = vshrl.u32 %v155, 7
  %v157 = vsub.s32 0, %v156
  %v158 = vrot.slane %v153, %v157
  %vm160 = vcmask 523264
  %v162 = vsel %vm160, %v137, 0
  %v165 = vsel %vm160, %v142, 0
  %167 = vmatprep.subr.mxu0 0.0
  %168 = vmatpush1.msra.mxu0 %v145
  %169 = vmatprep.subr.mxu0 0.0
  %170 = vmatpush1.msra.mxu0 %v146
  %171 = vmatprep.subr.mxu0 0.0
  %172 = vmatpush1.msra.mxu0 %v147
  %173 = vmatprep.subr.mxu0 0.0
  %174 = vmatpush1.msra.mxu0 %v148
  %175 = vmatprep.subr.mxu0 0.0
  %176 = vmatpush1.msra.mxu0 %v149
  %177 = vmatprep.subr.mxu0 0.0
  %178 = vmatpush1.msra.mxu0 %v150
  %179 = vmatprep.subr.mxu0 0.0
  %180 = vmatpush1.msra.mxu0 %v151
  %181 = vmatprep.subr.mxu0 0.0
  %182 = vmatpush1.msra.mxu0 %v152
  %183 = vmatprep.subr.mxu0 0.0
  %184 = vmatpush1.msra.mxu0 0.0
  %185 = vmatprep.subr.mxu0 0.0
  %186 = vmatpush1.msra.mxu0 0.0
  %187 = vmatprep.subr.mxu0 0.0
  %188 = vmatpush1.msra.mxu0 0.0
  %189 = vmatprep.subr.mxu0 0.0
  %190 = vmatpush1.msra.mxu0 0.0
  %191 = vmatprep.subr.mxu0 0.0
  %192 = vmatpush1.msra.mxu0 0.0
  %193 = vmatprep.subr.mxu0 0.0
  %194 = vmatpush1.msra.mxu0 0.0
  %195 = vmatprep.subr.mxu0 0.0
  %196 = vmatpush1.msra.mxu0 0.0
  %197 = vmatprep.subr.mxu0 0.0
  %198 = vmatpush1.msra.mxu0 0.0
  %199 = vmatprep.subr.mxu0 0.0
  %200 = vmatpush1.msra.mxu0 0.0
  %201 = vmatprep.subr.mxu0 0.0
  %202 = vmatpush1.msra.mxu0 0.0
  %203 = vmatprep.subr.mxu0 0.0
  %204 = vmatpush1.msra.mxu0 0.0
  %205 = vmatprep.subr.mxu0 0.0
  %206 = vmatpush1.msra.mxu0 0.0
  %207 = vmatprep.subr.mxu0 0.0
  %208 = vmatpush1.msra.mxu0 0.0
  %209 = vmatprep.subr.mxu0 0.0
  %210 = vmatpush1.msra.mxu0 0.0
  %211 = vmatprep.subr.mxu0 0.0
  %212 = vmatpush1.msra.mxu0 0.0
  %213 = vmatprep.subr.mxu0 0.0
  %214 = vmatpush1.msra.mxu0 0.0
  %215 = vmatprep.subr.mxu0 0.0
  %216 = vmatpush1.msra.mxu0 0.0
  %217 = vmatprep.subr.mxu0 0.0
  %218 = vmatpush1.msra.mxu0 0.0
  %219 = vmatprep.subr.mxu0 0.0
  %220 = vmatpush1.msra.mxu0 0.0
  %221 = vmatprep.subr.mxu0 0.0
  %222 = vmatpush1.msra.mxu0 0.0
  %223 = vmatprep.subr.mxu0 0.0
  %224 = vmatpush1.msra.mxu0 0.0
  %225 = vmatprep.subr.mxu0 0.0
  %226 = vmatpush1.msra.mxu0 0.0
  %227 = vmatprep.subr.mxu0 0.0
  %228 = vmatpush1.msra.mxu0 0.0
  %229 = vmatprep.subr.mxu0 0.0
  %230 = vmatpush1.msra.mxu0 0.0
  %231 = vmatprep.mubr.f32.mxu0 0.0
  %232 = vmatmul.mubr.f32.gmra.mrb[0].mxu0 %v162
  %v233 = vpop.f32.mrb[0].mxu0
  %v234 = vadd.f32 %v158, %v233
  %v235 = vpop.f32.mrb[0].mxu0
  %236 = vmatprep.mubr.f32.mxu0 0.0
  %237 = vmatmul.mubr.f32.gmra.mrb[0].mxu0 %v165
  %v238 = vpop.f32.mrb[0].mxu0
  %v239 = vadd.f32 %v158, %v238
  %v240 = vpop.f32.mrb[0].mxu0
  %241 = vdwg.mxu0
  %v242 = vld [vmem:[%s4] sm:$0xff]
  %v243 = vld [vmem:[%s4 + $0x8] sm:$0xff]
  %v244 = vld [vmem:[%s4 + $0x10] sm:$0xff]
  %v245 = vld [vmem:[%s4 + $0x18] sm:$0xff]
  %v246 = vld [vmem:[%s4 + $0x20] sm:$0xff]
  %v247 = vld [vmem:[%s4 + $0x28] sm:$0xff]
  %v248 = vld [vmem:[%s4 + $0x30] sm:$0xff]
  %v249 = vld [vmem:[%s4 + $0x38] sm:$0xff]
  %v250 = vld [vmem:[%s10] sm:$0x1]
  %v252 = vlaneseq
  %v253 = vshrl.u32 %v252, 7
  %v254 = vsub.s32 0, %v253
  %v255 = vrot.slane %v250, %v254
  %257 = vmatprep.subr.mxu0 0.0
  %258 = vmatpush1.msra.mxu0 %v242
  %259 = vmatprep.subr.mxu0 0.0
  %260 = vmatpush1.msra.mxu0 %v243
  %261 = vmatprep.subr.mxu0 0.0
  %262 = vmatpush1.msra.mxu0 %v244
  %263 = vmatprep.subr.mxu0 0.0
  %264 = vmatpush1.msra.mxu0 %v245
  %265 = vmatprep.subr.mxu0 0.0
  %266 = vmatpush1.msra.mxu0 %v246
  %267 = vmatprep.subr.mxu0 0.0
  %268 = vmatpush1.msra.mxu0 %v247
  %269 = vmatprep.subr.mxu0 0.0
  %270 = vmatpush1.msra.mxu0 %v248
  %271 = vmatprep.subr.mxu0 0.0
  %272 = vmatpush1.msra.mxu0 %v249
  %273 = vmatprep.subr.mxu0 0.0
  %274 = vmatpush1.msra.mxu0 0.0
  %275 = vmatprep.subr.mxu0 0.0
  %276 = vmatpush1.msra.mxu0 0.0
  %277 = vmatprep.subr.mxu0 0.0
  %278 = vmatpush1.msra.mxu0 0.0
  %279 = vmatprep.subr.mxu0 0.0
  %280 = vmatpush1.msra.mxu0 0.0
  %281 = vmatprep.subr.mxu0 0.0
  %282 = vmatpush1.msra.mxu0 0.0
  %283 = vmatprep.subr.mxu0 0.0
  %284 = vmatpush1.msra.mxu0 0.0
  %285 = vmatprep.subr.mxu0 0.0
  %286 = vmatpush1.msra.mxu0 0.0
  %287 = vmatprep.subr.mxu0 0.0
  %288 = vmatpush1.msra.mxu0 0.0
  %289 = vmatprep.subr.mxu0 0.0
  %290 = vmatpush1.msra.mxu0 0.0
  %291 = vmatprep.subr.mxu0 0.0
  %292 = vmatpush1.msra.mxu0 0.0
  %293 = vmatprep.subr.mxu0 0.0
  %294 = vmatpush1.msra.mxu0 0.0
  %295 = vmatprep.subr.mxu0 0.0
  %296 = vmatpush1.msra.mxu0 0.0
  %297 = vmatprep.subr.mxu0 0.0
  %298 = vmatpush1.msra.mxu0 0.0
  %299 = vmatprep.subr.mxu0 0.0
  %300 = vmatpush1.msra.mxu0 0.0
  %301 = vmatprep.subr.mxu0 0.0
  %302 = vmatpush1.msra.mxu0 0.0
  %303 = vmatprep.subr.mxu0 0.0
  %304 = vmatpush1.msra.mxu0 0.0
  %305 = vmatprep.subr.mxu0 0.0
  %306 = vmatpush1.msra.mxu0 0.0
  %307 = vmatprep.subr.mxu0 0.0
  %308 = vmatpush1.msra.mxu0 0.0
  %309 = vmatprep.subr.mxu0 0.0
  %310 = vmatpush1.msra.mxu0 0.0
  %311 = vmatprep.subr.mxu0 0.0
  %312 = vmatpush1.msra.mxu0 0.0
  %313 = vmatprep.subr.mxu0 0.0
  %314 = vmatpush1.msra.mxu0 0.0
  %315 = vmatprep.subr.mxu0 0.0
  %316 = vmatpush1.msra.mxu0 0.0
  %317 = vmatprep.subr.mxu0 0.0
  %318 = vmatpush1.msra.mxu0 0.0
  %319 = vmatprep.subr.mxu0 0.0
  %320 = vmatpush1.msra.mxu0 0.0
  %321 = vmatprep.mubr.f32.mxu0 0.0
  %322 = vmatmul.mubr.f32.gmra.mrb[0].mxu0 %v162
  %v323 = vpop.f32.mrb[0].mxu0
  %v324 = vadd.f32 %v255, %v323
  %v325 = vpop.f32.mrb[0].mxu0
  %326 = vmatprep.mubr.f32.mxu0 0.0
  %327 = vmatmul.mubr.f32.gmra.mrb[0].mxu0 %v165
  %v328 = vpop.f32.mrb[0].mxu0
  %v329 = vadd.f32 %v255, %v328
  %v330 = vpop.f32.mrb[0].mxu0
  %331 = vdwg.mxu0
  %v332 = vld [vmem:[%s5] sm:$0xff]
  %v333 = vld [vmem:[%s5 + $0x8] sm:$0xff]
  %v334 = vld [vmem:[%s5 + $0x10] sm:$0xff]
  %v335 = vld [vmem:[%s5 + $0x18] sm:$0xff]
  %v336 = vld [vmem:[%s5 + $0x20] sm:$0xff]
  %v337 = vld [vmem:[%s5 + $0x28] sm:$0xff]
  %v338 = vld [vmem:[%s5 + $0x30] sm:$0xff]
  %v339 = vld [vmem:[%s5 + $0x38] sm:$0xff]
  %v340 = vld [vmem:[%s11] sm:$0x1]
  %v342 = vlaneseq
  %v343 = vshrl.u32 %v342, 7
  %v344 = vsub.s32 0, %v343
  %v345 = vrot.slane %v340, %v344
  %347 = vmatprep.subr.mxu0 0.0
  %348 = vmatpush1.msra.mxu0 %v332
  %349 = vmatprep.subr.mxu0 0.0
  %350 = vmatpush1.msra.mxu0 %v333
  %351 = vmatprep.subr.mxu0 0.0
  %352 = vmatpush1.msra.mxu0 %v334
  %353 = vmatprep.subr.mxu0 0.0
  %354 = vmatpush1.msra.mxu0 %v335
  %355 = vmatprep.subr.mxu0 0.0
  %356 = vmatpush1.msra.mxu0 %v336
  %357 = vmatprep.subr.mxu0 0.0
  %358 = vmatpush1.msra.mxu0 %v337
  %359 = vmatprep.subr.mxu0 0.0
  %360 = vmatpush1.msra.mxu0 %v338
  %361 = vmatprep.subr.mxu0 0.0
  %362 = vmatpush1.msra.mxu0 %v339
  %363 = vmatprep.subr.mxu0 0.0
  %364 = vmatpush1.msra.mxu0 0.0
  %365 = vmatprep.subr.mxu0 0.0
  %366 = vmatpush1.msra.mxu0 0.0
  %367 = vmatprep.subr.mxu0 0.0
  %368 = vmatpush1.msra.mxu0 0.0
  %369 = vmatprep.subr.mxu0 0.0
  %370 = vmatpush1.msra.mxu0 0.0
  %371 = vmatprep.subr.mxu0 0.0
  %372 = vmatpush1.msra.mxu0 0.0
  %373 = vmatprep.subr.mxu0 0.0
  %374 = vmatpush1.msra.mxu0 0.0
  %375 = vmatprep.subr.mxu0 0.0
  %376 = vmatpush1.msra.mxu0 0.0
  %377 = vmatprep.subr.mxu0 0.0
  %378 = vmatpush1.msra.mxu0 0.0
  %379 = vmatprep.subr.mxu0 0.0
  %380 = vmatpush1.msra.mxu0 0.0
  %381 = vmatprep.subr.mxu0 0.0
  %382 = vmatpush1.msra.mxu0 0.0
  %383 = vmatprep.subr.mxu0 0.0
  %384 = vmatpush1.msra.mxu0 0.0
  %385 = vmatprep.subr.mxu0 0.0
  %386 = vmatpush1.msra.mxu0 0.0
  %387 = vmatprep.subr.mxu0 0.0
  %388 = vmatpush1.msra.mxu0 0.0
  %389 = vmatprep.subr.mxu0 0.0
  %390 = vmatpush1.msra.mxu0 0.0
  %391 = vmatprep.subr.mxu0 0.0
  %392 = vmatpush1.msra.mxu0 0.0
  %393 = vmatprep.subr.mxu0 0.0
  %394 = vmatpush1.msra.mxu0 0.0
  %395 = vmatprep.subr.mxu0 0.0
  %396 = vmatpush1.msra.mxu0 0.0
  %397 = vmatprep.subr.mxu0 0.0
  %398 = vmatpush1.msra.mxu0 0.0
  %399 = vmatprep.subr.mxu0 0.0
  %400 = vmatpush1.msra.mxu0 0.0
  %401 = vmatprep.subr.mxu0 0.0
  %402 = vmatpush1.msra.mxu0 0.0
  %403 = vmatprep.subr.mxu0 0.0
  %404 = vmatpush1.msra.mxu0 0.0
  %405 = vmatprep.subr.mxu0 0.0
  %406 = vmatpush1.msra.mxu0 0.0
  %407 = vmatprep.subr.mxu0 0.0
  %408 = vmatpush1.msra.mxu0 0.0
  %409 = vmatprep.subr.mxu0 0.0
  %410 = vmatpush1.msra.mxu0 0.0
  %411 = vmatprep.mubr.f32.mxu0 0.0
  %412 = vmatmul.mubr.f32.gmra.mrb[0].mxu0 %v162
  %v413 = vpop.f32.mrb[0].mxu0
  %v414 = vadd.f32 %v345, %v413
  %v415 = vpop.f32.mrb[0].mxu0
  %416 = vmatprep.mubr.f32.mxu0 0.0
  %417 = vmatmul.mubr.f32.gmra.mrb[0].mxu0 %v165
  %v418 = vpop.f32.mrb[0].mxu0
  %v419 = vadd.f32 %v345, %v418
  %v420 = vpop.f32.mrb[0].mxu0
  %421 = vdwg.mxu0
  %v422 = vld [vmem:[%s6] sm:$0xff]
  %v423 = vld [vmem:[%s6 + $0x8] sm:$0xff]
  %v424 = vld [vmem:[%s6 + $0x10] sm:$0xff]
  %v425 = vld [vmem:[%s6 + $0x18] sm:$0xff]
  %v426 = vld [vmem:[%s7] sm:$0xff]
  %v427 = vld [vmem:[%s7 + $0x8] sm:$0xff]
  %v428 = vld [vmem:[%s7 + $0x10] sm:$0xff]
  %v429 = vld [vmem:[%s7 + $0x18] sm:$0xff]
  %v430 = vld [vmem:[%s8] sm:$0xff]
  %v431 = vld [vmem:[%s8 + $0x8] sm:$0xff]
  %v432 = vld [vmem:[%s8 + $0x10] sm:$0xff]
  %v433 = vld [vmem:[%s8 + $0x18] sm:$0xff]
  %v434 = vld [vmem:[%s12] sm:$0x1]
  %v436 = vsel %vm63, 0.0, 0
  %438 = vmatprep.subr.mxu0 0.0
  %439 = vmatpush1.msra.mxu0 %v422
  %440 = vmatprep.subr.mxu0 0.0
  %441 = vmatpush1.msra.mxu0 %v423
  %442 = vmatprep.subr.mxu0 0.0
  %443 = vmatpush1.msra.mxu0 %v424
  %444 = vmatprep.subr.mxu0 0.0
  %445 = vmatpush1.msra.mxu0 %v425
  %446 = vmatprep.subr.mxu0 0.0
  %447 = vmatpush1.msra.mxu0 0.0
  %448 = vmatprep.subr.mxu0 0.0
  %449 = vmatpush1.msra.mxu0 0.0
  %450 = vmatprep.subr.mxu0 0.0
  %451 = vmatpush1.msra.mxu0 0.0
  %452 = vmatprep.subr.mxu0 0.0
  %453 = vmatpush1.msra.mxu0 0.0
  %454 = vmatprep.subr.mxu0 0.0
  %455 = vmatpush1.msra.mxu0 0.0
  %456 = vmatprep.subr.mxu0 0.0
  %457 = vmatpush1.msra.mxu0 0.0
  %458 = vmatprep.subr.mxu0 0.0
  %459 = vmatpush1.msra.mxu0 0.0
  %460 = vmatprep.subr.mxu0 0.0
  %461 = vmatpush1.msra.mxu0 0.0
  %462 = vmatprep.subr.mxu0 0.0
  %463 = vmatpush1.msra.mxu0 0.0
  %464 = vmatprep.subr.mxu0 0.0
  %465 = vmatpush1.msra.mxu0 0.0
  %466 = vmatprep.subr.mxu0 0.0
  %467 = vmatpush1.msra.mxu0 0.0
  %468 = vmatprep.subr.mxu0 0.0
  %469 = vmatpush1.msra.mxu0 0.0
  %470 = vmatprep.subr.mxu0 0.0
  %471 = vmatpush1.msra.mxu0 0.0
  %472 = vmatprep.subr.mxu0 0.0
  %473 = vmatpush1.msra.mxu0 0.0
  %474 = vmatprep.subr.mxu0 0.0
  %475 = vmatpush1.msra.mxu0 0.0
  %476 = vmatprep.subr.mxu0 0.0
  %477 = vmatpush1.msra.mxu0 0.0
  %478 = vmatprep.subr.mxu0 0.0
  %479 = vmatpush1.msra.mxu0 0.0
  %480 = vmatprep.subr.mxu0 0.0
  %481 = vmatpush1.msra.mxu0 0.0
  %482 = vmatprep.subr.mxu0 0.0
  %483 = vmatpush1.msra.mxu0 0.0
  %484 = vmatprep.subr.mxu0 0.0
  %485 = vmatpush1.msra.mxu0 0.0
  %486 = vmatprep.subr.mxu0 0.0
  %487 = vmatpush1.msra.mxu0 0.0
  %488 = vmatprep.subr.mxu0 0.0
  %489 = vmatpush1.msra.mxu0 0.0
  %490 = vmatprep.subr.mxu0 0.0
  %491 = vmatpush1.msra.mxu0 0.0
  %492 = vmatprep.subr.mxu0 0.0
  %493 = vmatpush1.msra.mxu0 0.0
  %494 = vmatprep.subr.mxu0 0.0
  %495 = vmatpush1.msra.mxu0 0.0
  %496 = vmatprep.subr.mxu0 0.0
  %497 = vmatpush1.msra.mxu0 0.0
  %498 = vmatprep.subr.mxu0 0.0
  %499 = vmatpush1.msra.mxu0 0.0
  %500 = vmatprep.subr.mxu0 0.0
  %501 = vmatpush1.msra.mxu0 0.0
  %502 = vmatprep.mubr.f32.mxu0 0.0
  %503 = vmatmul.mubr.f32.gmra.mrb[0].mxu0 %v436
  %v504 = vpop.f32.mrb[0].mxu0
  %v505 = vadd.f32 0.0, %v504
  %v506 = vpop.f32.mrb[0].mxu0
  %507 = vdwg.mxu0
  %508 = vmatprep.subr.mxu0 0.0
  %509 = vmatpush1.msra.mxu0 %v426
  %510 = vmatprep.subr.mxu0 0.0
  %511 = vmatpush1.msra.mxu0 %v427
  %512 = vmatprep.subr.mxu0 0.0
  %513 = vmatpush1.msra.mxu0 %v428
  %514 = vmatprep.subr.mxu0 0.0
  %515 = vmatpush1.msra.mxu0 %v429
  %516 = vmatprep.subr.mxu0 0.0
  %517 = vmatpush1.msra.mxu0 0.0
  %518 = vmatprep.subr.mxu0 0.0
  %519 = vmatpush1.msra.mxu0 0.0
  %520 = vmatprep.subr.mxu0 0.0
  %521 = vmatpush1.msra.mxu0 0.0
  %522 = vmatprep.subr.mxu0 0.0
  %523 = vmatpush1.msra.mxu0 0.0
  %524 = vmatprep.subr.mxu0 0.0
  %525 = vmatpush1.msra.mxu0 0.0
  %526 = vmatprep.subr.mxu0 0.0
  %527 = vmatpush1.msra.mxu0 0.0
  %528 = vmatprep.subr.mxu0 0.0
  %529 = vmatpush1.msra.mxu0 0.0
  %530 = vmatprep.subr.mxu0 0.0
  %531 = vmatpush1.msra.mxu0 0.0
  %532 = vmatprep.subr.mxu0 0.0
  %533 = vmatpush1.msra.mxu0 0.0
  %534 = vmatprep.subr.mxu0 0.0
  %535 = vmatpush1.msra.mxu0 0.0
  %536 = vmatprep.subr.mxu0 0.0
  %537 = vmatpush1.msra.mxu0 0.0
  %538 = vmatprep.subr.mxu0 0.0
  %539 = vmatpush1.msra.mxu0 0.0
  %540 = vmatprep.subr.mxu0 0.0
  %541 = vmatpush1.msra.mxu0 0.0
  %542 = vmatprep.subr.mxu0 0.0
  %543 = vmatpush1.msra.mxu0 0.0
  %544 = vmatprep.subr.mxu0 0.0
  %545 = vmatpush1.msra.mxu0 0.0
  %546 = vmatprep.subr.mxu0 0.0
  %547 = vmatpush1.msra.mxu0 0.0
  %548 = vmatprep.subr.mxu0 0.0
  %549 = vmatpush1.msra.mxu0 0.0
  %550 = vmatprep.subr.mxu0 0.0
  %551 = vmatpush1.msra.mxu0 0.0
  %552 = vmatprep.subr.mxu0 0.0
  %553 = vmatpush1.msra.mxu0 0.0
  %554 = vmatprep.subr.mxu0 0.0
  %555 = vmatpush1.msra.mxu0 0.0
  %556 = vmatprep.subr.mxu0 0.0
  %557 = vmatpush1.msra.mxu0 0.0
  %558 = vmatprep.subr.mxu0 0.0
  %559 = vmatpush1.msra.mxu0 0.0
  %560 = vmatprep.subr.mxu0 0.0
  %561 = vmatpush1.msra.mxu0 0.0
  %562 = vmatprep.subr.mxu0 0.0
  %563 = vmatpush1.msra.mxu0 0.0
  %564 = vmatprep.subr.mxu0 0.0
  %565 = vmatpush1.msra.mxu0 0.0
  %566 = vmatprep.subr.mxu0 0.0
  %567 = vmatpush1.msra.mxu0 0.0
  %568 = vmatprep.subr.mxu0 0.0
  %569 = vmatpush1.msra.mxu0 0.0
  %570 = vmatprep.subr.mxu0 0.0
  %571 = vmatpush1.msra.mxu0 0.0
  %572 = vmatprep.mubr.f32.mxu0 0.0
  %573 = vmatmul.mubr.f32.gmra.mrb[0].mxu0 %v436
  %v574 = vpop.f32.mrb[0].mxu0
  %v575 = vadd.f32 0.0, %v574
  %v576 = vpop.f32.mrb[0].mxu0
  %577 = vdwg.mxu0
  %v579 = vlaneseq
  %v580 = vshrl.u32 %v579, 7
  %v581 = vsub.s32 0, %v580
  %v582 = vrot.slane %v434, %v581
  %584 = vmatprep.subr.mxu0 0.0
  %585 = vmatpush1.msra.mxu0 %v430
  %586 = vmatprep.subr.mxu0 0.0
  %587 = vmatpush1.msra.mxu0 %v431
  %588 = vmatprep.subr.mxu0 0.0
  %589 = vmatpush1.msra.mxu0 %v432
  %590 = vmatprep.subr.mxu0 0.0
  %591 = vmatpush1.msra.mxu0 %v433
  %592 = vmatprep.subr.mxu0 0.0
  %593 = vmatpush1.msra.mxu0 0.0
  %594 = vmatprep.subr.mxu0 0.0
  %595 = vmatpush1.msra.mxu0 0.0
  %596 = vmatprep.subr.mxu0 0.0
  %597 = vmatpush1.msra.mxu0 0.0
  %598 = vmatprep.subr.mxu0 0.0
  %599 = vmatpush1.msra.mxu0 0.0
  %600 = vmatprep.subr.mxu0 0.0
  %601 = vmatpush1.msra.mxu0 0.0
  %602 = vmatprep.subr.mxu0 0.0
  %603 = vmatpush1.msra.mxu0 0.0
  %604 = vmatprep.subr.mxu0 0.0
  %605 = vmatpush1.msra.mxu0 0.0
  %606 = vmatprep.subr.mxu0 0.0
  %607 = vmatpush1.msra.mxu0 0.0
  %608 = vmatprep.subr.mxu0 0.0
  %609 = vmatpush1.msra.mxu0 0.0
  %610 = vmatprep.subr.mxu0 0.0
  %611 = vmatpush1.msra.mxu0 0.0
  %612 = vmatprep.subr.mxu0 0.0
  %613 = vmatpush1.msra.mxu0 0.0
  %614 = vmatprep.subr.mxu0 0.0
  %615 = vmatpush1.msra.mxu0 0.0
  %616 = vmatprep.subr.mxu0 0.0
  %617 = vmatpush1.msra.mxu0 0.0
  %618 = vmatprep.subr.mxu0 0.0
  %619 = vmatpush1.msra.mxu0 0.0
  %620 = vmatprep.subr.mxu0 0.0
  %621 = vmatpush1.msra.mxu0 0.0
  %622 = vmatprep.subr.mxu0 0.0
  %623 = vmatpush1.msra.mxu0 0.0
  %624 = vmatprep.subr.mxu0 0.0
  %625 = vmatpush1.msra.mxu0 0.0
  %626 = vmatprep.subr.mxu0 0.0
  %627 = vmatpush1.msra.mxu0 0.0
  %628 = vmatprep.subr.mxu0 0.0
  %629 = vmatpush1.msra.mxu0 0.0
  %630 = vmatprep.subr.mxu0 0.0
  %631 = vmatpush1.msra.mxu0 0.0
  %632 = vmatprep.subr.mxu0 0.0
  %633 = vmatpush1.msra.mxu0 0.0
  %634 = vmatprep.subr.mxu0 0.0
  %635 = vmatpush1.msra.mxu0 0.0
  %636 = vmatprep.subr.mxu0 0.0
  %637 = vmatpush1.msra.mxu0 0.0
  %638 = vmatprep.subr.mxu0 0.0
  %639 = vmatpush1.msra.mxu0 0.0
  %640 = vmatprep.subr.mxu0 0.0
  %641 = vmatpush1.msra.mxu0 0.0
  %642 = vmatprep.subr.mxu0 0.0
  %643 = vmatpush1.msra.mxu0 0.0
  %644 = vmatprep.subr.mxu0 0.0
  %645 = vmatpush1.msra.mxu0 0.0
  %646 = vmatprep.subr.mxu0 0.0
  %647 = vmatpush1.msra.mxu0 0.0
  %648 = vmatprep.mubr.f32.mxu0 0.0
  %649 = vmatmul.mubr.f32.gmra.mrb[0].mxu0 %v436
  %v650 = vpop.f32.mrb[0].mxu0
  %v651 = vadd.f32 %v582, %v650
  %v652 = vpop.f32.mrb[0].mxu0
  %653 = vdwg.mxu0
  %v654 = vadd.f32 %v234, %v505
  %v655 = vxor.u32 %v654, 2147483648
  %v656 = vmul.f32 %v655, 1.442695
  %v657 = vpow.pop %v656
  %v658 = vadd.f32 %v657, 1.0
  %v659 = vrcp.pop %v658
  %v660 = vmul.f32 1.0, %v659
  %v661 = vadd.f32 %v324, %v575
  %v662 = vxor.u32 %v661, 2147483648
  %v663 = vmul.f32 %v662, 1.442695
  %v664 = vpow.pop %v663
  %v665 = vadd.f32 %v664, 1.0
  %v666 = vrcp.pop %v665
  %v667 = vmul.f32 1.0, %v666
  %v668 = vmul.f32 %v660, %v651
  %v669 = vadd.f32 %v414, %v668
  %v670 = vtanh.pop %v669
  %v671 = vsub.f32 1.0, %v667
  %v672 = vmul.f32 %v671, %v670
  %v673 = vmul.f32 %v667, 0.0
  %v674 = vadd.f32 %v672, %v673
  %vm675 = vcmask 254976
  %676 = vst.msk [vmem:[#allocation2] sm:$0x3] %vm675, %v674
  %v678 = vsel %vm63, %v674, 0
  %680 = vmatprep.subr.mxu0 0.0
  %681 = vmatpush1.msra.mxu0 %v422
  %682 = vmatprep.subr.mxu0 0.0
  %683 = vmatpush1.msra.mxu0 %v423
  %684 = vmatprep.subr.mxu0 0.0
  %685 = vmatpush1.msra.mxu0 %v424
  %686 = vmatprep.subr.mxu0 0.0
  %687 = vmatpush1.msra.mxu0 %v425
  %688 = vmatprep.subr.mxu0 0.0
  %689 = vmatpush1.msra.mxu0 0.0
  %690 = vmatprep.subr.mxu0 0.0
  %691 = vmatpush1.msra.mxu0 0.0
  %692 = vmatprep.subr.mxu0 0.0
  %693 = vmatpush1.msra.mxu0 0.0
  %694 = vmatprep.subr.mxu0 0.0
  %695 = vmatpush1.msra.mxu0 0.0
  %696 = vmatprep.subr.mxu0 0.0
  %697 = vmatpush1.msra.mxu0 0.0
  %698 = vmatprep.subr.mxu0 0.0
  %699 = vmatpush1.msra.mxu0 0.0
  %700 = vmatprep.subr.mxu0 0.0
  %701 = vmatpush1.msra.mxu0 0.0
  %702 = vmatprep.subr.mxu0 0.0
  %703 = vmatpush1.msra.mxu0 0.0
  %704 = vmatprep.subr.mxu0 0.0
  %705 = vmatpush1.msra.mxu0 0.0
  %706 = vmatprep.subr.mxu0 0.0
  %707 = vmatpush1.msra.mxu0 0.0
  %708 = vmatprep.subr.mxu0 0.0
  %709 = vmatpush1.msra.mxu0 0.0
  %710 = vmatprep.subr.mxu0 0.0
  %711 = vmatpush1.msra.mxu0 0.0
  %712 = vmatprep.subr.mxu0 0.0
  %713 = vmatpush1.msra.mxu0 0.0
  %714 = vmatprep.subr.mxu0 0.0
  %715 = vmatpush1.msra.mxu0 0.0
  %716 = vmatprep.subr.mxu0 0.0
  %717 = vmatpush1.msra.mxu0 0.0
  %718 = vmatprep.subr.mxu0 0.0
  %719 = vmatpush1.msra.mxu0 0.0
  %720 = vmatprep.subr.mxu0 0.0
  %721 = vmatpush1.msra.mxu0 0.0
  %722 = vmatprep.subr.mxu0 0.0
  %723 = vmatpush1.msra.mxu0 0.0
  %724 = vmatprep.subr.mxu0 0.0
  %725 = vmatpush1.msra.mxu0 0.0
  %726 = vmatprep.subr.mxu0 0.0
  %727 = vmatpush1.msra.mxu0 0.0
  %728 = vmatprep.subr.mxu0 0.0
  %729 = vmatpush1.msra.mxu0 0.0
  %730 = vmatprep.subr.mxu0 0.0
  %731 = vmatpush1.msra.mxu0 0.0
  %732 = vmatprep.subr.mxu0 0.0
  %733 = vmatpush1.msra.mxu0 0.0
  %734 = vmatprep.subr.mxu0 0.0
  %735 = vmatpush1.msra.mxu0 0.0
  %736 = vmatprep.subr.mxu0 0.0
  %737 = vmatpush1.msra.mxu0 0.0
  %738 = vmatprep.subr.mxu0 0.0
  %739 = vmatpush1.msra.mxu0 0.0
  %740 = vmatprep.subr.mxu0 0.0
  %741 = vmatpush1.msra.mxu0 0.0
  %742 = vmatprep.subr.mxu0 0.0
  %743 = vmatpush1.msra.mxu0 0.0
  %744 = vmatprep.mubr.f32.mxu0 0.0
  %745 = vmatmul.mubr.f32.gmra.mrb[0].mxu0 %v678
  %v746 = vpop.f32.mrb[0].mxu0
  %v747 = vadd.f32 0.0, %v746
  %v748 = vpop.f32.mrb[0].mxu0
  %749 = vdwg.mxu0
  %750 = vmatprep.subr.mxu0 0.0
  %751 = vmatpush1.msra.mxu0 %v426
  %752 = vmatprep.subr.mxu0 0.0
  %753 = vmatpush1.msra.mxu0 %v427
  %754 = vmatprep.subr.mxu0 0.0
  %755 = vmatpush1.msra.mxu0 %v428
  %756 = vmatprep.subr.mxu0 0.0
  %757 = vmatpush1.msra.mxu0 %v429
  %758 = vmatprep.subr.mxu0 0.0
  %759 = vmatpush1.msra.mxu0 0.0
  %760 = vmatprep.subr.mxu0 0.0
  %761 = vmatpush1.msra.mxu0 0.0
  %762 = vmatprep.subr.mxu0 0.0
  %763 = vmatpush1.msra.mxu0 0.0
  %764 = vmatprep.subr.mxu0 0.0
  %765 = vmatpush1.msra.mxu0 0.0
  %766 = vmatprep.subr.mxu0 0.0
  %767 = vmatpush1.msra.mxu0 0.0
  %768 = vmatprep.subr.mxu0 0.0
  %769 = vmatpush1.msra.mxu0 0.0
  %770 = vmatprep.subr.mxu0 0.0
  %771 = vmatpush1.msra.mxu0 0.0
  %772 = vmatprep.subr.mxu0 0.0
  %773 = vmatpush1.msra.mxu0 0.0
  %774 = vmatprep.subr.mxu0 0.0
  %775 = vmatpush1.msra.mxu0 0.0
  %776 = vmatprep.subr.mxu0 0.0
  %777 = vmatpush1.msra.mxu0 0.0
  %778 = vmatprep.subr.mxu0 0.0
  %779 = vmatpush1.msra.mxu0 0.0
  %780 = vmatprep.subr.mxu0 0.0
  %781 = vmatpush1.msra.mxu0 0.0
  %782 = vmatprep.subr.mxu0 0.0
  %783 = vmatpush1.msra.mxu0 0.0
  %784 = vmatprep.subr.mxu0 0.0
  %785 = vmatpush1.msra.mxu0 0.0
  %786 = vmatprep.subr.mxu0 0.0
  %787 = vmatpush1.msra.mxu0 0.0
  %788 = vmatprep.subr.mxu0 0.0
  %789 = vmatpush1.msra.mxu0 0.0
  %790 = vmatprep.subr.mxu0 0.0
  %791 = vmatpush1.msra.mxu0 0.0
  %792 = vmatprep.subr.mxu0 0.0
  %793 = vmatpush1.msra.mxu0 0.0
  %794 = vmatprep.subr.mxu0 0.0
  %795 = vmatpush1.msra.mxu0 0.0
  %796 = vmatprep.subr.mxu0 0.0
  %797 = vmatpush1.msra.mxu0 0.0
  %798 = vmatprep.subr.mxu0 0.0
  %799 = vmatpush1.msra.mxu0 0.0
  %800 = vmatprep.subr.mxu0 0.0
  %801 = vmatpush1.msra.mxu0 0.0
  %802 = vmatprep.subr.mxu0 0.0
  %803 = vmatpush1.msra.mxu0 0.0
  %804 = vmatprep.subr.mxu0 0.0
  %805 = vmatpush1.msra.mxu0 0.0
  %806 = vmatprep.subr.mxu0 0.0
  %807 = vmatpush1.msra.mxu0 0.0
  %808 = vmatprep.subr.mxu0 0.0
  %809 = vmatpush1.msra.mxu0 0.0
  %810 = vmatprep.subr.mxu0 0.0
  %811 = vmatpush1.msra.mxu0 0.0
  %812 = vmatprep.subr.mxu0 0.0
  %813 = vmatpush1.msra.mxu0 0.0
  %814 = vmatprep.mubr.f32.mxu0 0.0
  %815 = vmatmul.mubr.f32.gmra.mrb[0].mxu0 %v678
  %v816 = vpop.f32.mrb[0].mxu0
  %v817 = vadd.f32 0.0, %v816
  %v818 = vpop.f32.mrb[0].mxu0
  %819 = vdwg.mxu0
  %820 = vmatprep.subr.mxu0 0.0
  %821 = vmatpush1.msra.mxu0 %v430
  %822 = vmatprep.subr.mxu0 0.0
  %823 = vmatpush1.msra.mxu0 %v431
  %824 = vmatprep.subr.mxu0 0.0
  %825 = vmatpush1.msra.mxu0 %v432
  %826 = vmatprep.subr.mxu0 0.0
  %827 = vmatpush1.msra.mxu0 %v433
  %828 = vmatprep.subr.mxu0 0.0
  %829 = vmatpush1.msra.mxu0 0.0
  %830 = vmatprep.subr.mxu0 0.0
  %831 = vmatpush1.msra.mxu0 0.0
  %832 = vmatprep.subr.mxu0 0.0
  %833 = vmatpush1.msra.mxu0 0.0
  %834 = vmatprep.subr.mxu0 0.0
  %835 = vmatpush1.msra.mxu0 0.0
  %836 = vmatprep.subr.mxu0 0.0
  %837 = vmatpush1.msra.mxu0 0.0
  %838 = vmatprep.subr.mxu0 0.0
  %839 = vmatpush1.msra.mxu0 0.0
  %840 = vmatprep.subr.mxu0 0.0
  %841 = vmatpush1.msra.mxu0 0.0
  %842 = vmatprep.subr.mxu0 0.0
  %843 = vmatpush1.msra.mxu0 0.0
  %844 = vmatprep.subr.mxu0 0.0
  %845 = vmatpush1.msra.mxu0 0.0
  %846 = vmatprep.subr.mxu0 0.0
  %847 = vmatpush1.msra.mxu0 0.0
  %848 = vmatprep.subr.mxu0 0.0
  %849 = vmatpush1.msra.mxu0 0.0
  %850 = vmatprep.subr.mxu0 0.0
  %851 = vmatpush1.msra.mxu0 0.0
  %852 = vmatprep.subr.mxu0 0.0
  %853 = vmatpush1.msra.mxu0 0.0
  %854 = vmatprep.subr.mxu0 0.0
  %855 = vmatpush1.msra.mxu0 0.0
  %856 = vmatprep.subr.mxu0 0.0
  %857 = vmatpush1.msra.mxu0 0.0
  %858 = vmatprep.subr.mxu0 0.0
  %859 = vmatpush1.msra.mxu0 0.0
  %860 = vmatprep.subr.mxu0 0.0
  %861 = vmatpush1.msra.mxu0 0.0
  %862 = vmatprep.subr.mxu0 0.0
  %863 = vmatpush1.msra.mxu0 0.0
  %864 = vmatprep.subr.mxu0 0.0
  %865 = vmatpush1.msra.mxu0 0.0
  %866 = vmatprep.subr.mxu0 0.0
  %867 = vmatpush1.msra.mxu0 0.0
  %868 = vmatprep.subr.mxu0 0.0
  %869 = vmatpush1.msra.mxu0 0.0
  %870 = vmatprep.subr.mxu0 0.0
  %871 = vmatpush1.msra.mxu0 0.0
  %872 = vmatprep.subr.mxu0 0.0
  %873 = vmatpush1.msra.mxu0 0.0
  %874 = vmatprep.subr.mxu0 0.0
  %875 = vmatpush1.msra.mxu0 0.0
  %876 = vmatprep.subr.mxu0 0.0
  %877 = vmatpush1.msra.mxu0 0.0
  %878 = vmatprep.subr.mxu0 0.0
  %879 = vmatpush1.msra.mxu0 0.0
  %880 = vmatprep.subr.mxu0 0.0
  %881 = vmatpush1.msra.mxu0 0.0
  %882 = vmatprep.subr.mxu0 0.0
  %883 = vmatpush1.msra.mxu0 0.0
  %884 = vmatprep.mubr.f32.mxu0 0.0
  %885 = vmatmul.mubr.f32.gmra.mrb[0].mxu0 %v678
  %v886 = vpop.f32.mrb[0].mxu0
  %v887 = vadd.f32 %v582, %v886
  %v888 = vpop.f32.mrb[0].mxu0
  %889 = vdwg.mxu0
  %v891 = vrot.slane %v747, 6
  %v893 = vadd.f32 %v234, %v891
  %v894 = vxor.u32 %v893, 2147483648
  %v895 = vmul.f32 %v894, 1.442695
  %v896 = vpow.pop %v895
  %v897 = vadd.f32 %v896, 1.0
  %v898 = vrcp.pop %v897
  %v899 = vmul.f32 1.0, %v898
  %v901 = vrot.slane %v817, 6
  %v903 = vadd.f32 %v324, %v901
  %v904 = vxor.u32 %v903, 2147483648
  %v905 = vmul.f32 %v904, 1.442695
  %v906 = vpow.pop %v905
  %v907 = vadd.f32 %v906, 1.0
  %v908 = vrcp.pop %v907
  %v909 = vmul.f32 1.0, %v908
  %v911 = vrot.slane %v887, 6
  %v913 = vmul.f32 %v899, %v911
  %v914 = vadd.f32 %v414, %v913
  %v915 = vtanh.pop %v914
  %v916 = vsub.f32 1.0, %v909
  %v917 = vmul.f32 %v916, %v915
  %v918 = vrot.slane %v674, 6
  %v920 = vmul.f32 %v909, %v918
  %v921 = vadd.f32 %v917, %v920
  %vm922 = vcmask 257026
  %923 = vst.msk [vmem:[#allocation2] sm:$0xc] %vm922, %v921
  %v925 = vrot.slane %v921, 2
  %v926 = vsel %vm63, %v925, 0
  %928 = vmatprep.subr.mxu0 0.0
  %929 = vmatpush1.msra.mxu0 %v422
  %930 = vmatprep.subr.mxu0 0.0
  %931 = vmatpush1.msra.mxu0 %v423
  %932 = vmatprep.subr.mxu0 0.0
  %933 = vmatpush1.msra.mxu0 %v424
  %934 = vmatprep.subr.mxu0 0.0
  %935 = vmatpush1.msra.mxu0 %v425
  %936 = vmatprep.subr.mxu0 0.0
  %937 = vmatpush1.msra.mxu0 0.0
  %938 = vmatprep.subr.mxu0 0.0
  %939 = vmatpush1.msra.mxu0 0.0
  %940 = vmatprep.subr.mxu0 0.0
  %941 = vmatpush1.msra.mxu0 0.0
  %942 = vmatprep.subr.mxu0 0.0
  %943 = vmatpush1.msra.mxu0 0.0
  %944 = vmatprep.subr.mxu0 0.0
  %945 = vmatpush1.msra.mxu0 0.0
  %946 = vmatprep.subr.mxu0 0.0
  %947 = vmatpush1.msra.mxu0 0.0
  %948 = vmatprep.subr.mxu0 0.0
  %949 = vmatpush1.msra.mxu0 0.0
  %950 = vmatprep.subr.mxu0 0.0
  %951 = vmatpush1.msra.mxu0 0.0
  %952 = vmatprep.subr.mxu0 0.0
  %953 = vmatpush1.msra.mxu0 0.0
  %954 = vmatprep.subr.mxu0 0.0
  %955 = vmatpush1.msra.mxu0 0.0
  %956 = vmatprep.subr.mxu0 0.0
  %957 = vmatpush1.msra.mxu0 0.0
  %958 = vmatprep.subr.mxu0 0.0
  %959 = vmatpush1.msra.mxu0 0.0
  %960 = vmatprep.subr.mxu0 0.0
  %961 = vmatpush1.msra.mxu0 0.0
  %962 = vmatprep.subr.mxu0 0.0
  %963 = vmatpush1.msra.mxu0 0.0
  %964 = vmatprep.subr.mxu0 0.0
  %965 = vmatpush1.msra.mxu0 0.0
  %966 = vmatprep.subr.mxu0 0.0
  %967 = vmatpush1.msra.mxu0 0.0
  %968 = vmatprep.subr.mxu0 0.0
  %969 = vmatpush1.msra.mxu0 0.0
  %970 = vmatprep.subr.mxu0 0.0
  %971 = vmatpush1.msra.mxu0 0.0
  %972 = vmatprep.subr.mxu0 0.0
  %973 = vmatpush1.msra.mxu0 0.0
  %974 = vmatprep.subr.mxu0 0.0
  %975 = vmatpush1.msra.mxu0 0.0
  %976 = vmatprep.subr.mxu0 0.0
  %977 = vmatpush1.msra.mxu0 0.0
  %978 = vmatprep.subr.mxu0 0.0
  %979 = vmatpush1.msra.mxu0 0.0
  %980 = vmatprep.subr.mxu0 0.0
  %981 = vmatpush1.msra.mxu0 0.0
  %982 = vmatprep.subr.mxu0 0.0
  %983 = vmatpush1.msra.mxu0 0.0
  %984 = vmatprep.subr.mxu0 0.0
  %985 = vmatpush1.msra.mxu0 0.0
  %986 = vmatprep.subr.mxu0 0.0
  %987 = vmatpush1.msra.mxu0 0.0
  %988 = vmatprep.subr.mxu0 0.0
  %989 = vmatpush1.msra.mxu0 0.0
  %990 = vmatprep.subr.mxu0 0.0
  %991 = vmatpush1.msra.mxu0 0.0
  %992 = vmatprep.mubr.f32.mxu0 0.0
  %993 = vmatmul.mubr.f32.gmra.mrb[0].mxu0 %v926
  %v994 = vpop.f32.mrb[0].mxu0
  %v995 = vadd.f32 0.0, %v994
  %v996 = vpop.f32.mrb[0].mxu0
  %997 = vdwg.mxu0
  %998 = vmatprep.subr.mxu0 0.0
  %999 = vmatpush1.msra.mxu0 %v426
  %1000 = vmatprep.subr.mxu0 0.0
  %1001 = vmatpush1.msra.mxu0 %v427
  %1002 = vmatprep.subr.mxu0 0.0
  %1003 = vmatpush1.msra.mxu0 %v428
  %1004 = vmatprep.subr.mxu0 0.0
  %1005 = vmatpush1.msra.mxu0 %v429
  %1006 = vmatprep.subr.mxu0 0.0
  %1007 = vmatpush1.msra.mxu0 0.0
  %1008 = vmatprep.subr.mxu0 0.0
  %1009 = vmatpush1.msra.mxu0 0.0
  %1010 = vmatprep.subr.mxu0 0.0
  %1011 = vmatpush1.msra.mxu0 0.0
  %1012 = vmatprep.subr.mxu0 0.0
  %1013 = vmatpush1.msra.mxu0 0.0
  %1014 = vmatprep.subr.mxu0 0.0
  %1015 = vmatpush1.msra.mxu0 0.0
  %1016 = vmatprep.subr.mxu0 0.0
  %1017 = vmatpush1.msra.mxu0 0.0
  %1018 = vmatprep.subr.mxu0 0.0
  %1019 = vmatpush1.msra.mxu0 0.0
  %1020 = vmatprep.subr.mxu0 0.0
  %1021 = vmatpush1.msra.mxu0 0.0
  %1022 = vmatprep.subr.mxu0 0.0
  %1023 = vmatpush1.msra.mxu0 0.0
  %1024 = vmatprep.subr.mxu0 0.0
  %1025 = vmatpush1.msra.mxu0 0.0
  %1026 = vmatprep.subr.mxu0 0.0
  %1027 = vmatpush1.msra.mxu0 0.0
  %1028 = vmatprep.subr.mxu0 0.0
  %1029 = vmatpush1.msra.mxu0 0.0
  %1030 = vmatprep.subr.mxu0 0.0
  %1031 = vmatpush1.msra.mxu0 0.0
  %1032 = vmatprep.subr.mxu0 0.0
  %1033 = vmatpush1.msra.mxu0 0.0
  %1034 = vmatprep.subr.mxu0 0.0
  %1035 = vmatpush1.msra.mxu0 0.0
  %1036 = vmatprep.subr.mxu0 0.0
  %1037 = vmatpush1.msra.mxu0 0.0
  %1038 = vmatprep.subr.mxu0 0.0
  %1039 = vmatpush1.msra.mxu0 0.0
  %1040 = vmatprep.subr.mxu0 0.0
  %1041 = vmatpush1.msra.mxu0 0.0
  %1042 = vmatprep.subr.mxu0 0.0
  %1043 = vmatpush1.msra.mxu0 0.0
  %1044 = vmatprep.subr.mxu0 0.0
  %1045 = vmatpush1.msra.mxu0 0.0
  %1046 = vmatprep.subr.mxu0 0.0
  %1047 = vmatpush1.msra.mxu0 0.0
  %1048 = vmatprep.subr.mxu0 0.0
  %1049 = vmatpush1.msra.mxu0 0.0
  %1050 = vmatprep.subr.mxu0 0.0
  %1051 = vmatpush1.msra.mxu0 0.0
  %1052 = vmatprep.subr.mxu0 0.0
  %1053 = vmatpush1.msra.mxu0 0.0
  %1054 = vmatprep.subr.mxu0 0.0
  %1055 = vmatpush1.msra.mxu0 0.0
  %1056 = vmatprep.subr.mxu0 0.0
  %1057 = vmatpush1.msra.mxu0 0.0
  %1058 = vmatprep.subr.mxu0 0.0
  %1059 = vmatpush1.msra.mxu0 0.0
  %1060 = vmatprep.subr.mxu0 0.0
  %1061 = vmatpush1.msra.mxu0 0.0
  %1062 = vmatprep.mubr.f32.mxu0 0.0
  %1063 = vmatmul.mubr.f32.gmra.mrb[0].mxu0 %v926
  %v1064 = vpop.f32.mrb[0].mxu0
  %v1065 = vadd.f32 0.0, %v1064
  %v1066 = vpop.f32.mrb[0].mxu0
  %1067 = vdwg.mxu0
  %1068 = vmatprep.subr.mxu0 0.0
  %1069 = vmatpush1.msra.mxu0 %v430
  %1070 = vmatprep.subr.mxu0 0.0
  %1071 = vmatpush1.msra.mxu0 %v431
  %1072 = vmatprep.subr.mxu0 0.0
  %1073 = vmatpush1.msra.mxu0 %v432
  %1074 = vmatprep.subr.mxu0 0.0
  %1075 = vmatpush1.msra.mxu0 %v433
  %1076 = vmatprep.subr.mxu0 0.0
  %1077 = vmatpush1.msra.mxu0 0.0
  %1078 = vmatprep.subr.mxu0 0.0
  %1079 = vmatpush1.msra.mxu0 0.0
  %1080 = vmatprep.subr.mxu0 0.0
  %1081 = vmatpush1.msra.mxu0 0.0
  %1082 = vmatprep.subr.mxu0 0.0
  %1083 = vmatpush1.msra.mxu0 0.0
  %1084 = vmatprep.subr.mxu0 0.0
  %1085 = vmatpush1.msra.mxu0 0.0
  %1086 = vmatprep.subr.mxu0 0.0
  %1087 = vmatpush1.msra.mxu0 0.0
  %1088 = vmatprep.subr.mxu0 0.0
  %1089 = vmatpush1.msra.mxu0 0.0
  %1090 = vmatprep.subr.mxu0 0.0
  %1091 = vmatpush1.msra.mxu0 0.0
  %1092 = vmatprep.subr.mxu0 0.0
  %1093 = vmatpush1.msra.mxu0 0.0
  %1094 = vmatprep.subr.mxu0 0.0
  %1095 = vmatpush1.msra.mxu0 0.0
  %1096 = vmatprep.subr.mxu0 0.0
  %1097 = vmatpush1.msra.mxu0 0.0
  %1098 = vmatprep.subr.mxu0 0.0
  %1099 = vmatpush1.msra.mxu0 0.0
  %1100 = vmatprep.subr.mxu0 0.0
  %1101 = vmatpush1.msra.mxu0 0.0
  %1102 = vmatprep.subr.mxu0 0.0
  %1103 = vmatpush1.msra.mxu0 0.0
  %1104 = vmatprep.subr.mxu0 0.0
  %1105 = vmatpush1.msra.mxu0 0.0
  %1106 = vmatprep.subr.mxu0 0.0
  %1107 = vmatpush1.msra.mxu0 0.0
  %1108 = vmatprep.subr.mxu0 0.0
  %1109 = vmatpush1.msra.mxu0 0.0
  %1110 = vmatprep.subr.mxu0 0.0
  %1111 = vmatpush1.msra.mxu0 0.0
  %1112 = vmatprep.subr.mxu0 0.0
  %1113 = vmatpush1.msra.mxu0 0.0
  %1114 = vmatprep.subr.mxu0 0.0
  %1115 = vmatpush1.msra.mxu0 0.0
  %1116 = vmatprep.subr.mxu0 0.0
  %1117 = vmatpush1.msra.mxu0 0.0
  %1118 = vmatprep.subr.mxu0 0.0
  %1119 = vmatpush1.msra.mxu0 0.0
  %1120 = vmatprep.subr.mxu0 0.0
  %1121 = vmatpush1.msra.mxu0 0.0
  %1122 = vmatprep.subr.mxu0 0.0
  %1123 = vmatpush1.msra.mxu0 0.0
  %1124 = vmatprep.subr.mxu0 0.0
  %1125 = vmatpush1.msra.mxu0 0.0
  %1126 = vmatprep.subr.mxu0 0.0
  %1127 = vmatpush1.msra.mxu0 0.0
  %1128 = vmatprep.subr.mxu0 0.0
  %1129 = vmatpush1.msra.mxu0 0.0
  %1130 = vmatprep.subr.mxu0 0.0
  %1131 = vmatpush1.msra.mxu0 0.0
  %1132 = vmatprep.mubr.f32.mxu0 0.0
  %1133 = vmatmul.mubr.f32.gmra.mrb[0].mxu0 %v926
  %v1134 = vpop.f32.mrb[0].mxu0
  %v1135 = vadd.f32 %v582, %v1134
  %v1136 = vpop.f32.mrb[0].mxu0
  %1137 = vdwg.mxu0
  %v1139 = vrot.slane %v995, 4
  %v1141 = vadd.f32 %v234, %v1139
  %v1142 = vxor.u32 %v1141, 2147483648
  %v1143 = vmul.f32 %v1142, 1.442695
  %v1144 = vpow.pop %v1143
  %v1145 = vadd.f32 %v1144, 1.0
  %v1146 = vrcp.pop %v1145
  %v1147 = vmul.f32 1.0, %v1146
  %v1149 = vrot.slane %v1065, 4
  %v1151 = vadd.f32 %v324, %v1149
  %v1152 = vxor.u32 %v1151, 2147483648
  %v1153 = vmul.f32 %v1152, 1.442695
  %v1154 = vpow.pop %v1153
  %v1155 = vadd.f32 %v1154, 1.0
  %v1156 = vrcp.pop %v1155
  %v1157 = vmul.f32 1.0, %v1156
  %v1159 = vrot.slane %v1135, 4
  %v1161 = vmul.f32 %v1147, %v1159
  %v1162 = vadd.f32 %v414, %v1161
  %v1163 = vtanh.pop %v1162
  %v1164 = vsub.f32 1.0, %v1157
  %v1165 = vmul.f32 %v1164, %v1163
  %v1166 = vrot.slane %v921, 6
  %v1168 = vmul.f32 %v1157, %v1166
  %v1169 = vadd.f32 %v1165, %v1168
  %vm1170 = vcmask 259076
  %1171 = vst.msk [vmem:[#allocation2] sm:$0x30] %vm1170, %v1169
  %v1173 = vrot.slane %v1169, 4
  %v1174 = vsel %vm63, %v1173, 0
  %1176 = vmatprep.subr.mxu0 0.0
  %1177 = vmatpush1.msra.mxu0 %v422
  %1178 = vmatprep.subr.mxu0 0.0
  %1179 = vmatpush1.msra.mxu0 %v423
  %1180 = vmatprep.subr.mxu0 0.0
  %1181 = vmatpush1.msra.mxu0 %v424
  %1182 = vmatprep.subr.mxu0 0.0
  %1183 = vmatpush1.msra.mxu0 %v425
  %1184 = vmatprep.subr.mxu0 0.0
  %1185 = vmatpush1.msra.mxu0 0.0
  %1186 = vmatprep.subr.mxu0 0.0
  %1187 = vmatpush1.msra.mxu0 0.0
  %1188 = vmatprep.subr.mxu0 0.0
  %1189 = vmatpush1.msra.mxu0 0.0
  %1190 = vmatprep.subr.mxu0 0.0
  %1191 = vmatpush1.msra.mxu0 0.0
  %1192 = vmatprep.subr.mxu0 0.0
  %1193 = vmatpush1.msra.mxu0 0.0
  %1194 = vmatprep.subr.mxu0 0.0
  %1195 = vmatpush1.msra.mxu0 0.0
  %1196 = vmatprep.subr.mxu0 0.0
  %1197 = vmatpush1.msra.mxu0 0.0
  %1198 = vmatprep.subr.mxu0 0.0
  %1199 = vmatpush1.msra.mxu0 0.0
  %1200 = vmatprep.subr.mxu0 0.0
  %1201 = vmatpush1.msra.mxu0 0.0
  %1202 = vmatprep.subr.mxu0 0.0
  %1203 = vmatpush1.msra.mxu0 0.0
  %1204 = vmatprep.subr.mxu0 0.0
  %1205 = vmatpush1.msra.mxu0 0.0
  %1206 = vmatprep.subr.mxu0 0.0
  %1207 = vmatpush1.msra.mxu0 0.0
  %1208 = vmatprep.subr.mxu0 0.0
  %1209 = vmatpush1.msra.mxu0 0.0
  %1210 = vmatprep.subr.mxu0 0.0
  %1211 = vmatpush1.msra.mxu0 0.0
  %1212 = vmatprep.subr.mxu0 0.0
  %1213 = vmatpush1.msra.mxu0 0.0
  %1214 = vmatprep.subr.mxu0 0.0
  %1215 = vmatpush1.msra.mxu0 0.0
  %1216 = vmatprep.subr.mxu0 0.0
  %1217 = vmatpush1.msra.mxu0 0.0
  %1218 = vmatprep.subr.mxu0 0.0
  %1219 = vmatpush1.msra.mxu0 0.0
  %1220 = vmatprep.subr.mxu0 0.0
  %1221 = vmatpush1.msra.mxu0 0.0
  %1222 = vmatprep.subr.mxu0 0.0
  %1223 = vmatpush1.msra.mxu0 0.0
  %1224 = vmatprep.subr.mxu0 0.0
  %1225 = vmatpush1.msra.mxu0 0.0
  %1226 = vmatprep.subr.mxu0 0.0
  %1227 = vmatpush1.msra.mxu0 0.0
  %1228 = vmatprep.subr.mxu0 0.0
  %1229 = vmatpush1.msra.mxu0 0.0
  %1230 = vmatprep.subr.mxu0 0.0
  %1231 = vmatpush1.msra.mxu0 0.0
  %1232 = vmatprep.subr.mxu0 0.0
  %1233 = vmatpush1.msra.mxu0 0.0
  %1234 = vmatprep.subr.mxu0 0.0
  %1235 = vmatpush1.msra.mxu0 0.0
  %1236 = vmatprep.subr.mxu0 0.0
  %1237 = vmatpush1.msra.mxu0 0.0
  %1238 = vmatprep.subr.mxu0 0.0
  %1239 = vmatpush1.msra.mxu0 0.0
  %1240 = vmatprep.mubr.f32.mxu0 0.0
  %1241 = vmatmul.mubr.f32.gmra.mrb[0].mxu0 %v1174
  %v1242 = vpop.f32.mrb[0].mxu0
  %v1243 = vadd.f32 0.0, %v1242
  %v1244 = vpop.f32.mrb[0].mxu0
  %1245 = vdwg.mxu0
  %1246 = vmatprep.subr.mxu0 0.0
  %1247 = vmatpush1.msra.mxu0 %v426
  %1248 = vmatprep.subr.mxu0 0.0
  %1249 = vmatpush1.msra.mxu0 %v427
  %1250 = vmatprep.subr.mxu0 0.0
  %1251 = vmatpush1.msra.mxu0 %v428
  %1252 = vmatprep.subr.mxu0 0.0
  %1253 = vmatpush1.msra.mxu0 %v429
  %1254 = vmatprep.subr.mxu0 0.0
  %1255 = vmatpush1.msra.mxu0 0.0
  %1256 = vmatprep.subr.mxu0 0.0
  %1257 = vmatpush1.msra.mxu0 0.0
  %1258 = vmatprep.subr.mxu0 0.0
  %1259 = vmatpush1.msra.mxu0 0.0
  %1260 = vmatprep.subr.mxu0 0.0
  %1261 = vmatpush1.msra.mxu0 0.0
  %1262 = vmatprep.subr.mxu0 0.0
  %1263 = vmatpush1.msra.mxu0 0.0
  %1264 = vmatprep.subr.mxu0 0.0
  %1265 = vmatpush1.msra.mxu0 0.0
  %1266 = vmatprep.subr.mxu0 0.0
  %1267 = vmatpush1.msra.mxu0 0.0
  %1268 = vmatprep.subr.mxu0 0.0
  %1269 = vmatpush1.msra.mxu0 0.0
  %1270 = vmatprep.subr.mxu0 0.0
  %1271 = vmatpush1.msra.mxu0 0.0
  %1272 = vmatprep.subr.mxu0 0.0
  %1273 = vmatpush1.msra.mxu0 0.0
  %1274 = vmatprep.subr.mxu0 0.0
  %1275 = vmatpush1.msra.mxu0 0.0
  %1276 = vmatprep.subr.mxu0 0.0
  %1277 = vmatpush1.msra.mxu0 0.0
  %1278 = vmatprep.subr.mxu0 0.0
  %1279 = vmatpush1.msra.mxu0 0.0
  %1280 = vmatprep.subr.mxu0 0.0
  %1281 = vmatpush1.msra.mxu0 0.0
  %1282 = vmatprep.subr.mxu0 0.0
  %1283 = vmatpush1.msra.mxu0 0.0
  %1284 = vmatprep.subr.mxu0 0.0
  %1285 = vmatpush1.msra.mxu0 0.0
  %1286 = vmatprep.subr.mxu0 0.0
  %1287 = vmatpush1.msra.mxu0 0.0
  %1288 = vmatprep.subr.mxu0 0.0
  %1289 = vmatpush1.msra.mxu0 0.0
  %1290 = vmatprep.subr.mxu0 0.0
  %1291 = vmatpush1.msra.mxu0 0.0
  %1292 = vmatprep.subr.mxu0 0.0
  %1293 = vmatpush1.msra.mxu0 0.0
  %1294 = vmatprep.subr.mxu0 0.0
  %1295 = vmatpush1.msra.mxu0 0.0
  %1296 = vmatprep.subr.mxu0 0.0
  %1297 = vmatpush1.msra.mxu0 0.0
  %1298 = vmatprep.subr.mxu0 0.0
  %1299 = vmatpush1.msra.mxu0 0.0
  %1300 = vmatprep.subr.mxu0 0.0
  %1301 = vmatpush1.msra.mxu0 0.0
  %1302 = vmatprep.subr.mxu0 0.0
  %1303 = vmatpush1.msra.mxu0 0.0
  %1304 = vmatprep.subr.mxu0 0.0
  %1305 = vmatpush1.msra.mxu0 0.0
  %1306 = vmatprep.subr.mxu0 0.0
  %1307 = vmatpush1.msra.mxu0 0.0
  %1308 = vmatprep.subr.mxu0 0.0
  %1309 = vmatpush1.msra.mxu0 0.0
  %1310 = vmatprep.mubr.f32.mxu0 0.0
  %1311 = vmatmul.mubr.f32.gmra.mrb[0].mxu0 %v1174
  %v1312 = vpop.f32.mrb[0].mxu0
  %v1313 = vadd.f32 0.0, %v1312
  %v1314 = vpop.f32.mrb[0].mxu0
  %1315 = vdwg.mxu0
  %1316 = vmatprep.subr.mxu0 0.0
  %1317 = vmatpush1.msra.mxu0 %v430
  %1318 = vmatprep.subr.mxu0 0.0
  %1319 = vmatpush1.msra.mxu0 %v431
  %1320 = vmatprep.subr.mxu0 0.0
  %1321 = vmatpush1.msra.mxu0 %v432
  %1322 = vmatprep.subr.mxu0 0.0
  %1323 = vmatpush1.msra.mxu0 %v433
  %1324 = vmatprep.subr.mxu0 0.0
  %1325 = vmatpush1.msra.mxu0 0.0
  %1326 = vmatprep.subr.mxu0 0.0
  %1327 = vmatpush1.msra.mxu0 0.0
  %1328 = vmatprep.subr.mxu0 0.0
  %1329 = vmatpush1.msra.mxu0 0.0
  %1330 = vmatprep.subr.mxu0 0.0
  %1331 = vmatpush1.msra.mxu0 0.0
  %1332 = vmatprep.subr.mxu0 0.0
  %1333 = vmatpush1.msra.mxu0 0.0
  %1334 = vmatprep.subr.mxu0 0.0
  %1335 = vmatpush1.msra.mxu0 0.0
  %1336 = vmatprep.subr.mxu0 0.0
  %1337 = vmatpush1.msra.mxu0 0.0
  %1338 = vmatprep.subr.mxu0 0.0
  %1339 = vmatpush1.msra.mxu0 0.0
  %1340 = vmatprep.subr.mxu0 0.0
  %1341 = vmatpush1.msra.mxu0 0.0
  %1342 = vmatprep.subr.mxu0 0.0
  %1343 = vmatpush1.msra.mxu0 0.0
  %1344 = vmatprep.subr.mxu0 0.0
  %1345 = vmatpush1.msra.mxu0 0.0
  %1346 = vmatprep.subr.mxu0 0.0
  %1347 = vmatpush1.msra.mxu0 0.0
  %1348 = vmatprep.subr.mxu0 0.0
  %1349 = vmatpush1.msra.mxu0 0.0
  %1350 = vmatprep.subr.mxu0 0.0
  %1351 = vmatpush1.msra.mxu0 0.0
  %1352 = vmatprep.subr.mxu0 0.0
  %1353 = vmatpush1.msra.mxu0 0.0
  %1354 = vmatprep.subr.mxu0 0.0
  %1355 = vmatpush1.msra.mxu0 0.0
  %1356 = vmatprep.subr.mxu0 0.0
  %1357 = vmatpush1.msra.mxu0 0.0
  %1358 = vmatprep.subr.mxu0 0.0
  %1359 = vmatpush1.msra.mxu0 0.0
  %1360 = vmatprep.subr.mxu0 0.0
  %1361 = vmatpush1.msra.mxu0 0.0
  %1362 = vmatprep.subr.mxu0 0.0
  %1363 = vmatpush1.msra.mxu0 0.0
  %1364 = vmatprep.subr.mxu0 0.0
  %1365 = vmatpush1.msra.mxu0 0.0
  %1366 = vmatprep.subr.mxu0 0.0
  %1367 = vmatpush1.msra.mxu0 0.0
  %1368 = vmatprep.subr.mxu0 0.0
  %1369 = vmatpush1.msra.mxu0 0.0
  %1370 = vmatprep.subr.mxu0 0.0
  %1371 = vmatpush1.msra.mxu0 0.0
  %1372 = vmatprep.subr.mxu0 0.0
  %1373 = vmatpush1.msra.mxu0 0.0
  %1374 = vmatprep.subr.mxu0 0.0
  %1375 = vmatpush1.msra.mxu0 0.0
  %1376 = vmatprep.subr.mxu0 0.0
  %1377 = vmatpush1.msra.mxu0 0.0
  %1378 = vmatprep.subr.mxu0 0.0
  %1379 = vmatpush1.msra.mxu0 0.0
  %1380 = vmatprep.mubr.f32.mxu0 0.0
  %1381 = vmatmul.mubr.f32.gmra.mrb[0].mxu0 %v1174
  %v1382 = vpop.f32.mrb[0].mxu0
  %v1383 = vadd.f32 %v582, %v1382
  %v1384 = vpop.f32.mrb[0].mxu0
  %1385 = vdwg.mxu0
  %v1387 = vrot.slane %v1243, 2
  %v1389 = vadd.f32 %v234, %v1387
  %v1390 = vxor.u32 %v1389, 2147483648
  %v1391 = vmul.f32 %v1390, 1.442695
  %v1392 = vpow.pop %v1391
  %v1393 = vadd.f32 %v1392, 1.0
  %v1394 = vrcp.pop %v1393
  %v1395 = vmul.f32 1.0, %v1394
  %v1397 = vrot.slane %v1313, 2
  %v1399 = vadd.f32 %v324, %v1397
  %v1400 = vxor.u32 %v1399, 2147483648
  %v1401 = vmul.f32 %v1400, 1.442695
  %v1402 = vpow.pop %v1401
  %v1403 = vadd.f32 %v1402, 1.0
  %v1404 = vrcp.pop %v1403
  %v1405 = vmul.f32 1.0, %v1404
  %v1407 = vrot.slane %v1383, 2
  %v1409 = vmul.f32 %v1395, %v1407
  %v1410 = vadd.f32 %v414, %v1409
  %v1411 = vtanh.pop %v1410
  %v1412 = vsub.f32 1.0, %v1405
  %v1413 = vmul.f32 %v1412, %v1411
  %v1414 = vrot.slane %v1169, 6
  %v1416 = vmul.f32 %v1405, %v1414
  %v1417 = vadd.f32 %v1413, %v1416
  %vm1418 = vcmask 261126
  %1419 = vst.msk [vmem:[#allocation2] sm:$0xc0] %vm1418, %v1417
  %v1421 = vrot.slane %v1417, 6
  %v1422 = vsel %vm63, %v1421, 0
  %1424 = vmatprep.subr.mxu0 0.0
  %1425 = vmatpush1.msra.mxu0 %v422
  %1426 = vmatprep.subr.mxu0 0.0
  %1427 = vmatpush1.msra.mxu0 %v423
  %1428 = vmatprep.subr.mxu0 0.0
  %1429 = vmatpush1.msra.mxu0 %v424
  %1430 = vmatprep.subr.mxu0 0.0
  %1431 = vmatpush1.msra.mxu0 %v425
  %1432 = vmatprep.subr.mxu0 0.0
  %1433 = vmatpush1.msra.mxu0 0.0
  %1434 = vmatprep.subr.mxu0 0.0
  %1435 = vmatpush1.msra.mxu0 0.0
  %1436 = vmatprep.subr.mxu0 0.0
  %1437 = vmatpush1.msra.mxu0 0.0
  %1438 = vmatprep.subr.mxu0 0.0
  %1439 = vmatpush1.msra.mxu0 0.0
  %1440 = vmatprep.subr.mxu0 0.0
  %1441 = vmatpush1.msra.mxu0 0.0
  %1442 = vmatprep.subr.mxu0 0.0
  %1443 = vmatpush1.msra.mxu0 0.0
  %1444 = vmatprep.subr.mxu0 0.0
  %1445 = vmatpush1.msra.mxu0 0.0
  %1446 = vmatprep.subr.mxu0 0.0
  %1447 = vmatpush1.msra.mxu0 0.0
  %1448 = vmatprep.subr.mxu0 0.0
  %1449 = vmatpush1.msra.mxu0 0.0
  %1450 = vmatprep.subr.mxu0 0.0
  %1451 = vmatpush1.msra.mxu0 0.0
  %1452 = vmatprep.subr.mxu0 0.0
  %1453 = vmatpush1.msra.mxu0 0.0
  %1454 = vmatprep.subr.mxu0 0.0
  %1455 = vmatpush1.msra.mxu0 0.0
  %1456 = vmatprep.subr.mxu0 0.0
  %1457 = vmatpush1.msra.mxu0 0.0
  %1458 = vmatprep.subr.mxu0 0.0
  %1459 = vmatpush1.msra.mxu0 0.0
  %1460 = vmatprep.subr.mxu0 0.0
  %1461 = vmatpush1.msra.mxu0 0.0
  %1462 = vmatprep.subr.mxu0 0.0
  %1463 = vmatpush1.msra.mxu0 0.0
  %1464 = vmatprep.subr.mxu0 0.0
  %1465 = vmatpush1.msra.mxu0 0.0
  %1466 = vmatprep.subr.mxu0 0.0
  %1467 = vmatpush1.msra.mxu0 0.0
  %1468 = vmatprep.subr.mxu0 0.0
  %1469 = vmatpush1.msra.mxu0 0.0
  %1470 = vmatprep.subr.mxu0 0.0
  %1471 = vmatpush1.msra.mxu0 0.0
  %1472 = vmatprep.subr.mxu0 0.0
  %1473 = vmatpush1.msra.mxu0 0.0
  %1474 = vmatprep.subr.mxu0 0.0
  %1475 = vmatpush1.msra.mxu0 0.0
  %1476 = vmatprep.subr.mxu0 0.0
  %1477 = vmatpush1.msra.mxu0 0.0
  %1478 = vmatprep.subr.mxu0 0.0
  %1479 = vmatpush1.msra.mxu0 0.0
  %1480 = vmatprep.subr.mxu0 0.0
  %1481 = vmatpush1.msra.mxu0 0.0
  %1482 = vmatprep.subr.mxu0 0.0
  %1483 = vmatpush1.msra.mxu0 0.0
  %1484 = vmatprep.subr.mxu0 0.0
  %1485 = vmatpush1.msra.mxu0 0.0
  %1486 = vmatprep.subr.mxu0 0.0
  %1487 = vmatpush1.msra.mxu0 0.0
  %1488 = vmatprep.mubr.f32.mxu0 0.0
  %1489 = vmatmul.mubr.f32.gmra.mrb[0].mxu0 %v1422
  %v1490 = vpop.f32.mrb[0].mxu0
  %v1491 = vadd.f32 0.0, %v1490
  %v1492 = vpop.f32.mrb[0].mxu0
  %1493 = vdwg.mxu0
  %1494 = vmatprep.subr.mxu0 0.0
  %1495 = vmatpush1.msra.mxu0 %v426
  %1496 = vmatprep.subr.mxu0 0.0
  %1497 = vmatpush1.msra.mxu0 %v427
  %1498 = vmatprep.subr.mxu0 0.0
  %1499 = vmatpush1.msra.mxu0 %v428
  %1500 = vmatprep.subr.mxu0 0.0
  %1501 = vmatpush1.msra.mxu0 %v429
  %1502 = vmatprep.subr.mxu0 0.0
  %1503 = vmatpush1.msra.mxu0 0.0
  %1504 = vmatprep.subr.mxu0 0.0
  %1505 = vmatpush1.msra.mxu0 0.0
  %1506 = vmatprep.subr.mxu0 0.0
  %1507 = vmatpush1.msra.mxu0 0.0
  %1508 = vmatprep.subr.mxu0 0.0
  %1509 = vmatpush1.msra.mxu0 0.0
  %1510 = vmatprep.subr.mxu0 0.0
  %1511 = vmatpush1.msra.mxu0 0.0
  %1512 = vmatprep.subr.mxu0 0.0
  %1513 = vmatpush1.msra.mxu0 0.0
  %1514 = vmatprep.subr.mxu0 0.0
  %1515 = vmatpush1.msra.mxu0 0.0
  %1516 = vmatprep.subr.mxu0 0.0
  %1517 = vmatpush1.msra.mxu0 0.0
  %1518 = vmatprep.subr.mxu0 0.0
  %1519 = vmatpush1.msra.mxu0 0.0
  %1520 = vmatprep.subr.mxu0 0.0
  %1521 = vmatpush1.msra.mxu0 0.0
  %1522 = vmatprep.subr.mxu0 0.0
  %1523 = vmatpush1.msra.mxu0 0.0
  %1524 = vmatprep.subr.mxu0 0.0
  %1525 = vmatpush1.msra.mxu0 0.0
  %1526 = vmatprep.subr.mxu0 0.0
  %1527 = vmatpush1.msra.mxu0 0.0
  %1528 = vmatprep.subr.mxu0 0.0
  %1529 = vmatpush1.msra.mxu0 0.0
  %1530 = vmatprep.subr.mxu0 0.0
  %1531 = vmatpush1.msra.mxu0 0.0
  %1532 = vmatprep.subr.mxu0 0.0
  %1533 = vmatpush1.msra.mxu0 0.0
  %1534 = vmatprep.subr.mxu0 0.0
  %1535 = vmatpush1.msra.mxu0 0.0
  %1536 = vmatprep.subr.mxu0 0.0
  %1537 = vmatpush1.msra.mxu0 0.0
  %1538 = vmatprep.subr.mxu0 0.0
  %1539 = vmatpush1.msra.mxu0 0.0
  %1540 = vmatprep.subr.mxu0 0.0
  %1541 = vmatpush1.msra.mxu0 0.0
  %1542 = vmatprep.subr.mxu0 0.0
  %1543 = vmatpush1.msra.mxu0 0.0
  %1544 = vmatprep.subr.mxu0 0.0
  %1545 = vmatpush1.msra.mxu0 0.0
  %1546 = vmatprep.subr.mxu0 0.0
  %1547 = vmatpush1.msra.mxu0 0.0
  %1548 = vmatprep.subr.mxu0 0.0
  %1549 = vmatpush1.msra.mxu0 0.0
  %1550 = vmatprep.subr.mxu0 0.0
  %1551 = vmatpush1.msra.mxu0 0.0
  %1552 = vmatprep.subr.mxu0 0.0
  %1553 = vmatpush1.msra.mxu0 0.0
  %1554 = vmatprep.subr.mxu0 0.0
  %1555 = vmatpush1.msra.mxu0 0.0
  %1556 = vmatprep.subr.mxu0 0.0
  %1557 = vmatpush1.msra.mxu0 0.0
  %1558 = vmatprep.mubr.f32.mxu0 0.0
  %1559 = vmatmul.mubr.f32.gmra.mrb[0].mxu0 %v1422
  %v1560 = vpop.f32.mrb[0].mxu0
  %v1561 = vadd.f32 0.0, %v1560
  %v1562 = vpop.f32.mrb[0].mxu0
  %1563 = vdwg.mxu0
  %1564 = vmatprep.subr.mxu0 0.0
  %1565 = vmatpush1.msra.mxu0 %v430
  %1566 = vmatprep.subr.mxu0 0.0
  %1567 = vmatpush1.msra.mxu0 %v431
  %1568 = vmatprep.subr.mxu0 0.0
  %1569 = vmatpush1.msra.mxu0 %v432
  %1570 = vmatprep.subr.mxu0 0.0
  %1571 = vmatpush1.msra.mxu0 %v433
  %1572 = vmatprep.subr.mxu0 0.0
  %1573 = vmatpush1.msra.mxu0 0.0
  %1574 = vmatprep.subr.mxu0 0.0
  %1575 = vmatpush1.msra.mxu0 0.0
  %1576 = vmatprep.subr.mxu0 0.0
  %1577 = vmatpush1.msra.mxu0 0.0
  %1578 = vmatprep.subr.mxu0 0.0
  %1579 = vmatpush1.msra.mxu0 0.0
  %1580 = vmatprep.subr.mxu0 0.0
  %1581 = vmatpush1.msra.mxu0 0.0
  %1582 = vmatprep.subr.mxu0 0.0
  %1583 = vmatpush1.msra.mxu0 0.0
  %1584 = vmatprep.subr.mxu0 0.0
  %1585 = vmatpush1.msra.mxu0 0.0
  %1586 = vmatprep.subr.mxu0 0.0
  %1587 = vmatpush1.msra.mxu0 0.0
  %1588 = vmatprep.subr.mxu0 0.0
  %1589 = vmatpush1.msra.mxu0 0.0
  %1590 = vmatprep.subr.mxu0 0.0
  %1591 = vmatpush1.msra.mxu0 0.0
  %1592 = vmatprep.subr.mxu0 0.0
  %1593 = vmatpush1.msra.mxu0 0.0
  %1594 = vmatprep.subr.mxu0 0.0
  %1595 = vmatpush1.msra.mxu0 0.0
  %1596 = vmatprep.subr.mxu0 0.0
  %1597 = vmatpush1.msra.mxu0 0.0
  %1598 = vmatprep.subr.mxu0 0.0
  %1599 = vmatpush1.msra.mxu0 0.0
  %1600 = vmatprep.subr.mxu0 0.0
  %1601 = vmatpush1.msra.mxu0 0.0
  %1602 = vmatprep.subr.mxu0 0.0
  %1603 = vmatpush1.msra.mxu0 0.0
  %1604 = vmatprep.subr.mxu0 0.0
  %1605 = vmatpush1.msra.mxu0 0.0
  %1606 = vmatprep.subr.mxu0 0.0
  %1607 = vmatpush1.msra.mxu0 0.0
  %1608 = vmatprep.subr.mxu0 0.0
  %1609 = vmatpush1.msra.mxu0 0.0
  %1610 = vmatprep.subr.mxu0 0.0
  %1611 = vmatpush1.msra.mxu0 0.0
  %1612 = vmatprep.subr.mxu0 0.0
  %1613 = vmatpush1.msra.mxu0 0.0
  %1614 = vmatprep.subr.mxu0 0.0
  %1615 = vmatpush1.msra.mxu0 0.0
  %1616 = vmatprep.subr.mxu0 0.0
  %1617 = vmatpush1.msra.mxu0 0.0
  %1618 = vmatprep.subr.mxu0 0.0
  %1619 = vmatpush1.msra.mxu0 0.0
  %1620 = vmatprep.subr.mxu0 0.0
  %1621 = vmatpush1.msra.mxu0 0.0
  %1622 = vmatprep.subr.mxu0 0.0
  %1623 = vmatpush1.msra.mxu0 0.0
  %1624 = vmatprep.subr.mxu0 0.0
  %1625 = vmatpush1.msra.mxu0 0.0
  %1626 = vmatprep.subr.mxu0 0.0
  %1627 = vmatpush1.msra.mxu0 0.0
  %1628 = vmatprep.mubr.f32.mxu0 0.0
  %1629 = vmatmul.mubr.f32.gmra.mrb[0].mxu0 %v1422
  %v1630 = vpop.f32.mrb[0].mxu0
  %v1631 = vadd.f32 %v582, %v1630
  %v1632 = vpop.f32.mrb[0].mxu0
  %1633 = vdwg.mxu0
  %v1634 = vadd.f32 %v239, %v1491
  %v1635 = vxor.u32 %v1634, 2147483648
  %v1636 = vmul.f32 %v1635, 1.442695
  %v1637 = vpow.pop %v1636
  %v1638 = vadd.f32 %v1637, 1.0
  %v1639 = vrcp.pop %v1638
  %v1640 = vmul.f32 1.0, %v1639
  %v1641 = vadd.f32 %v329, %v1561
  %v1642 = vxor.u32 %v1641, 2147483648
  %v1643 = vmul.f32 %v1642, 1.442695
  %v1644 = vpow.pop %v1643
  %v1645 = vadd.f32 %v1644, 1.0
  %v1646 = vrcp.pop %v1645
  %v1647 = vmul.f32 1.0, %v1646
  %v1648 = vmul.f32 %v1640, %v1631
  %v1649 = vadd.f32 %v419, %v1648
  %v1650 = vtanh.pop %v1649
  %v1651 = vsub.f32 1.0, %v1647
  %v1652 = vmul.f32 %v1651, %v1650
  %v1654 = vmul.f32 %v1647, %v1421
  %v1655 = vadd.f32 %v1652, %v1654
  %1656 = vst.msk [vmem:[#allocation2 + $0x8] sm:$0x3] %vm675, %v1655
  %v1658 = vsel %vm63, %v1655, 0
  %1660 = vmatprep.subr.mxu0 0.0
  %1661 = vmatpush1.msra.mxu0 %v422
  %1662 = vmatprep.subr.mxu0 0.0
  %1663 = vmatpush1.msra.mxu0 %v423
  %1664 = vmatprep.subr.mxu0 0.0
  %1665 = vmatpush1.msra.mxu0 %v424
  %1666 = vmatprep.subr.mxu0 0.0
  %1667 = vmatpush1.msra.mxu0 %v425
  %1668 = vmatprep.subr.mxu0 0.0
  %1669 = vmatpush1.msra.mxu0 0.0
  %1670 = vmatprep.subr.mxu0 0.0
  %1671 = vmatpush1.msra.mxu0 0.0
  %1672 = vmatprep.subr.mxu0 0.0
  %1673 = vmatpush1.msra.mxu0 0.0
  %1674 = vmatprep.subr.mxu0 0.0
  %1675 = vmatpush1.msra.mxu0 0.0
  %1676 = vmatprep.subr.mxu0 0.0
  %1677 = vmatpush1.msra.mxu0 0.0
  %1678 = vmatprep.subr.mxu0 0.0
  %1679 = vmatpush1.msra.mxu0 0.0
  %1680 = vmatprep.subr.mxu0 0.0
  %1681 = vmatpush1.msra.mxu0 0.0
  %1682 = vmatprep.subr.mxu0 0.0
  %1683 = vmatpush1.msra.mxu0 0.0
  %1684 = vmatprep.subr.mxu0 0.0
  %1685 = vmatpush1.msra.mxu0 0.0
  %1686 = vmatprep.subr.mxu0 0.0
  %1687 = vmatpush1.msra.mxu0 0.0
  %1688 = vmatprep.subr.mxu0 0.0
  %1689 = vmatpush1.msra.mxu0 0.0
  %1690 = vmatprep.subr.mxu0 0.0
  %1691 = vmatpush1.msra.mxu0 0.0
  %1692 = vmatprep.subr.mxu0 0.0
  %1693 = vmatpush1.msra.mxu0 0.0
  %1694 = vmatprep.subr.mxu0 0.0
  %1695 = vmatpush1.msra.mxu0 0.0
  %1696 = vmatprep.subr.mxu0 0.0
  %1697 = vmatpush1.msra.mxu0 0.0
  %1698 = vmatprep.subr.mxu0 0.0
  %1699 = vmatpush1.msra.mxu0 0.0
  %1700 = vmatprep.subr.mxu0 0.0
  %1701 = vmatpush1.msra.mxu0 0.0
  %1702 = vmatprep.subr.mxu0 0.0
  %1703 = vmatpush1.msra.mxu0 0.0
  %1704 = vmatprep.subr.mxu0 0.0
  %1705 = vmatpush1.msra.mxu0 0.0
  %1706 = vmatprep.subr.mxu0 0.0
  %1707 = vmatpush1.msra.mxu0 0.0
  %1708 = vmatprep.subr.mxu0 0.0
  %1709 = vmatpush1.msra.mxu0 0.0
  %1710 = vmatprep.subr.mxu0 0.0
  %1711 = vmatpush1.msra.mxu0 0.0
  %1712 = vmatprep.subr.mxu0 0.0
  %1713 = vmatpush1.msra.mxu0 0.0
  %1714 = vmatprep.subr.mxu0 0.0
  %1715 = vmatpush1.msra.mxu0 0.0
  %1716 = vmatprep.subr.mxu0 0.0
  %1717 = vmatpush1.msra.mxu0 0.0
  %1718 = vmatprep.subr.mxu0 0.0
  %1719 = vmatpush1.msra.mxu0 0.0
  %1720 = vmatprep.subr.mxu0 0.0
  %1721 = vmatpush1.msra.mxu0 0.0
  %1722 = vmatprep.subr.mxu0 0.0
  %1723 = vmatpush1.msra.mxu0 0.0
  %1724 = vmatprep.mubr.f32.mxu0 0.0
  %1725 = vmatmul.mubr.f32.gmra.mrb[0].mxu0 %v1658
  %v1726 = vpop.f32.mrb[0].mxu0
  %v1727 = vadd.f32 0.0, %v1726
  %v1728 = vpop.f32.mrb[0].mxu0
  %1729 = vdwg.mxu0
  %1730 = vmatprep.subr.mxu0 0.0
  %1731 = vmatpush1.msra.mxu0 %v426
  %1732 = vmatprep.subr.mxu0 0.0
  %1733 = vmatpush1.msra.mxu0 %v427
  %1734 = vmatprep.subr.mxu0 0.0
  %1735 = vmatpush1.msra.mxu0 %v428
  %1736 = vmatprep.subr.mxu0 0.0
  %1737 = vmatpush1.msra.mxu0 %v429
  %1738 = vmatprep.subr.mxu0 0.0
  %1739 = vmatpush1.msra.mxu0 0.0
  %1740 = vmatprep.subr.mxu0 0.0
  %1741 = vmatpush1.msra.mxu0 0.0
  %1742 = vmatprep.subr.mxu0 0.0
  %1743 = vmatpush1.msra.mxu0 0.0
  %1744 = vmatprep.subr.mxu0 0.0
  %1745 = vmatpush1.msra.mxu0 0.0
  %1746 = vmatprep.subr.mxu0 0.0
  %1747 = vmatpush1.msra.mxu0 0.0
  %1748 = vmatprep.subr.mxu0 0.0
  %1749 = vmatpush1.msra.mxu0 0.0
  %1750 = vmatprep.subr.mxu0 0.0
  %1751 = vmatpush1.msra.mxu0 0.0
  %1752 = vmatprep.subr.mxu0 0.0
  %1753 = vmatpush1.msra.mxu0 0.0
  %1754 = vmatprep.subr.mxu0 0.0
  %1755 = vmatpush1.msra.mxu0 0.0
  %1756 = vmatprep.subr.mxu0 0.0
  %1757 = vmatpush1.msra.mxu0 0.0
  %1758 = vmatprep.subr.mxu0 0.0
  %1759 = vmatpush1.msra.mxu0 0.0
  %1760 = vmatprep.subr.mxu0 0.0
  %1761 = vmatpush1.msra.mxu0 0.0
  %1762 = vmatprep.subr.mxu0 0.0
  %1763 = vmatpush1.msra.mxu0 0.0
  %1764 = vmatprep.subr.mxu0 0.0
  %1765 = vmatpush1.msra.mxu0 0.0
  %1766 = vmatprep.subr.mxu0 0.0
  %1767 = vmatpush1.msra.mxu0 0.0
  %1768 = vmatprep.subr.mxu0 0.0
  %1769 = vmatpush1.msra.mxu0 0.0
  %1770 = vmatprep.subr.mxu0 0.0
  %1771 = vmatpush1.msra.mxu0 0.0
  %1772 = vmatprep.subr.mxu0 0.0
  %1773 = vmatpush1.msra.mxu0 0.0
  %1774 = vmatprep.subr.mxu0 0.0
  %1775 = vmatpush1.msra.mxu0 0.0
  %1776 = vmatprep.subr.mxu0 0.0
  %1777 = vmatpush1.msra.mxu0 0.0
  %1778 = vmatprep.subr.mxu0 0.0
  %1779 = vmatpush1.msra.mxu0 0.0
  %1780 = vmatprep.subr.mxu0 0.0
  %1781 = vmatpush1.msra.mxu0 0.0
  %1782 = vmatprep.subr.mxu0 0.0
  %1783 = vmatpush1.msra.mxu0 0.0
  %1784 = vmatprep.subr.mxu0 0.0
  %1785 = vmatpush1.msra.mxu0 0.0
  %1786 = vmatprep.subr.mxu0 0.0
  %1787 = vmatpush1.msra.mxu0 0.0
  %1788 = vmatprep.subr.mxu0 0.0
  %1789 = vmatpush1.msra.mxu0 0.0
  %1790 = vmatprep.subr.mxu0 0.0
  %1791 = vmatpush1.msra.mxu0 0.0
  %1792 = vmatprep.subr.mxu0 0.0
  %1793 = vmatpush1.msra.mxu0 0.0
  %1794 = vmatprep.mubr.f32.mxu0 0.0
  %1795 = vmatmul.mubr.f32.gmra.mrb[0].mxu0 %v1658
  %v1796 = vpop.f32.mrb[0].mxu0
  %v1797 = vadd.f32 0.0, %v1796
  %v1798 = vpop.f32.mrb[0].mxu0
  %1799 = vdwg.mxu0
  %1800 = vmatprep.subr.mxu0 0.0
  %1801 = vmatpush1.msra.mxu0 %v430
  %1802 = vmatprep.subr.mxu0 0.0
  %1803 = vmatpush1.msra.mxu0 %v431
  %1804 = vmatprep.subr.mxu0 0.0
  %1805 = vmatpush1.msra.mxu0 %v432
  %1806 = vmatprep.subr.mxu0 0.0
  %1807 = vmatpush1.msra.mxu0 %v433
  %1808 = vmatprep.subr.mxu0 0.0
  %1809 = vmatpush1.msra.mxu0 0.0
  %1810 = vmatprep.subr.mxu0 0.0
  %1811 = vmatpush1.msra.mxu0 0.0
  %1812 = vmatprep.subr.mxu0 0.0
  %1813 = vmatpush1.msra.mxu0 0.0
  %1814 = vmatprep.subr.mxu0 0.0
  %1815 = vmatpush1.msra.mxu0 0.0
  %1816 = vmatprep.subr.mxu0 0.0
  %1817 = vmatpush1.msra.mxu0 0.0
  %1818 = vmatprep.subr.mxu0 0.0
  %1819 = vmatpush1.msra.mxu0 0.0
  %1820 = vmatprep.subr.mxu0 0.0
  %1821 = vmatpush1.msra.mxu0 0.0
  %1822 = vmatprep.subr.mxu0 0.0
  %1823 = vmatpush1.msra.mxu0 0.0
  %1824 = vmatprep.subr.mxu0 0.0
  %1825 = vmatpush1.msra.mxu0 0.0
  %1826 = vmatprep.subr.mxu0 0.0
  %1827 = vmatpush1.msra.mxu0 0.0
  %1828 = vmatprep.subr.mxu0 0.0
  %1829 = vmatpush1.msra.mxu0 0.0
  %1830 = vmatprep.subr.mxu0 0.0
  %1831 = vmatpush1.msra.mxu0 0.0
  %1832 = vmatprep.subr.mxu0 0.0
  %1833 = vmatpush1.msra.mxu0 0.0
  %1834 = vmatprep.subr.mxu0 0.0
  %1835 = vmatpush1.msra.mxu0 0.0
  %1836 = vmatprep.subr.mxu0 0.0
  %1837 = vmatpush1.msra.mxu0 0.0
  %1838 = vmatprep.subr.mxu0 0.0
  %1839 = vmatpush1.msra.mxu0 0.0
  %1840 = vmatprep.subr.mxu0 0.0
  %1841 = vmatpush1.msra.mxu0 0.0
  %1842 = vmatprep.subr.mxu0 0.0
  %1843 = vmatpush1.msra.mxu0 0.0
  %1844 = vmatprep.subr.mxu0 0.0
  %1845 = vmatpush1.msra.mxu0 0.0
  %1846 = vmatprep.subr.mxu0 0.0
  %1847 = vmatpush1.msra.mxu0 0.0
  %1848 = vmatprep.subr.mxu0 0.0
  %1849 = vmatpush1.msra.mxu0 0.0
  %1850 = vmatprep.subr.mxu0 0.0
  %1851 = vmatpush1.msra.mxu0 0.0
  %1852 = vmatprep.subr.mxu0 0.0
  %1853 = vmatpush1.msra.mxu0 0.0
  %1854 = vmatprep.subr.mxu0 0.0
  %1855 = vmatpush1.msra.mxu0 0.0
  %1856 = vmatprep.subr.mxu0 0.0
  %1857 = vmatpush1.msra.mxu0 0.0
  %1858 = vmatprep.subr.mxu0 0.0
  %1859 = vmatpush1.msra.mxu0 0.0
  %1860 = vmatprep.subr.mxu0 0.0
  %1861 = vmatpush1.msra.mxu0 0.0
  %1862 = vmatprep.subr.mxu0 0.0
  %1863 = vmatpush1.msra.mxu0 0.0
  %1864 = vmatprep.mubr.f32.mxu0 0.0
  %1865 = vmatmul.mubr.f32.gmra.mrb[0].mxu0 %v1658
  %v1866 = vpop.f32.mrb[0].mxu0
  %v1867 = vadd.f32 %v582, %v1866
  %v1868 = vpop.f32.mrb[0].mxu0
  %1869 = vdwg.mxu0
  %v1871 = vrot.slane %v1727, 6
  %v1873 = vadd.f32 %v239, %v1871
  %v1874 = vxor.u32 %v1873, 2147483648
  %v1875 = vmul.f32 %v1874, 1.442695
  %v1876 = vpow.pop %v1875
  %v1877 = vadd.f32 %v1876, 1.0
  %v1878 = vrcp.pop %v1877
  %v1879 = vmul.f32 1.0, %v1878
  %v1881 = vrot.slane %v1797, 6
  %v1883 = vadd.f32 %v329, %v1881
  %v1884 = vxor.u32 %v1883, 2147483648
  %v1885 = vmul.f32 %v1884, 1.442695
  %v1886 = vpow.pop %v1885
  %v1887 = vadd.f32 %v1886, 1.0
  %v1888 = vrcp.pop %v1887
  %v1889 = vmul.f32 1.0, %v1888
  %v1891 = vrot.slane %v1867, 6
  %v1893 = vmul.f32 %v1879, %v1891
  %v1894 = vadd.f32 %v419, %v1893
  %v1895 = vtanh.pop %v1894
  %v1896 = vsub.f32 1.0, %v1889
  %v1897 = vmul.f32 %v1896, %v1895
  %v1898 = vrot.slane %v1655, 6
  %v1900 = vmul.f32 %v1889, %v1898
  %v1901 = vadd.f32 %v1897, %v1900
  %1902 = vst.msk [vmem:[#allocation2 + $0x8] sm:$0xc] %vm922, %v1901
  %v1904 = vrot.slane %v1901, 2
  %v1905 = vsel %vm63, %v1904, 0
  %1907 = vmatprep.subr.mxu0 0.0
  %1908 = vmatpush1.msra.mxu0 %v422
  %1909 = vmatprep.subr.mxu0 0.0
  %1910 = vmatpush1.msra.mxu0 %v423
  %1911 = vmatprep.subr.mxu0 0.0
  %1912 = vmatpush1.msra.mxu0 %v424
  %1913 = vmatprep.subr.mxu0 0.0
  %1914 = vmatpush1.msra.mxu0 %v425
  %1915 = vmatprep.subr.mxu0 0.0
  %1916 = vmatpush1.msra.mxu0 0.0
  %1917 = vmatprep.subr.mxu0 0.0
  %1918 = vmatpush1.msra.mxu0 0.0
  %1919 = vmatprep.subr.mxu0 0.0
  %1920 = vmatpush1.msra.mxu0 0.0
  %1921 = vmatprep.subr.mxu0 0.0
  %1922 = vmatpush1.msra.mxu0 0.0
  %1923 = vmatprep.subr.mxu0 0.0
  %1924 = vmatpush1.msra.mxu0 0.0
  %1925 = vmatprep.subr.mxu0 0.0
  %1926 = vmatpush1.msra.mxu0 0.0
  %1927 = vmatprep.subr.mxu0 0.0
  %1928 = vmatpush1.msra.mxu0 0.0
  %1929 = vmatprep.subr.mxu0 0.0
  %1930 = vmatpush1.msra.mxu0 0.0
  %1931 = vmatprep.subr.mxu0 0.0
  %1932 = vmatpush1.msra.mxu0 0.0
  %1933 = vmatprep.subr.mxu0 0.0
  %1934 = vmatpush1.msra.mxu0 0.0
  %1935 = vmatprep.subr.mxu0 0.0
  %1936 = vmatpush1.msra.mxu0 0.0
  %1937 = vmatprep.subr.mxu0 0.0
  %1938 = vmatpush1.msra.mxu0 0.0
  %1939 = vmatprep.subr.mxu0 0.0
  %1940 = vmatpush1.msra.mxu0 0.0
  %1941 = vmatprep.subr.mxu0 0.0
  %1942 = vmatpush1.msra.mxu0 0.0
  %1943 = vmatprep.subr.mxu0 0.0
  %1944 = vmatpush1.msra.mxu0 0.0
  %1945 = vmatprep.subr.mxu0 0.0
  %1946 = vmatpush1.msra.mxu0 0.0
  %1947 = vmatprep.subr.mxu0 0.0
  %1948 = vmatpush1.msra.mxu0 0.0
  %1949 = vmatprep.subr.mxu0 0.0
  %1950 = vmatpush1.msra.mxu0 0.0
  %1951 = vmatprep.subr.mxu0 0.0
  %1952 = vmatpush1.msra.mxu0 0.0
  %1953 = vmatprep.subr.mxu0 0.0
  %1954 = vmatpush1.msra.mxu0 0.0
  %1955 = vmatprep.subr.mxu0 0.0
  %1956 = vmatpush1.msra.mxu0 0.0
  %1957 = vmatprep.subr.mxu0 0.0
  %1958 = vmatpush1.msra.mxu0 0.0
  %1959 = vmatprep.subr.mxu0 0.0
  %1960 = vmatpush1.msra.mxu0 0.0
  %1961 = vmatprep.subr.mxu0 0.0
  %1962 = vmatpush1.msra.mxu0 0.0
  %1963 = vmatprep.subr.mxu0 0.0
  %1964 = vmatpush1.msra.mxu0 0.0
  %1965 = vmatprep.subr.mxu0 0.0
  %1966 = vmatpush1.msra.mxu0 0.0
  %1967 = vmatprep.subr.mxu0 0.0
  %1968 = vmatpush1.msra.mxu0 0.0
  %1969 = vmatprep.subr.mxu0 0.0
  %1970 = vmatpush1.msra.mxu0 0.0
  %1971 = vmatprep.mubr.f32.mxu0 0.0
  %1972 = vmatmul.mubr.f32.gmra.mrb[0].mxu0 %v1905
  %v1973 = vpop.f32.mrb[0].mxu0
  %v1974 = vadd.f32 0.0, %v1973
  %v1975 = vpop.f32.mrb[0].mxu0
  %1976 = vdwg.mxu0
  %1977 = vmatprep.subr.mxu0 0.0
  %1978 = vmatpush1.msra.mxu0 %v426
  %1979 = vmatprep.subr.mxu0 0.0
  %1980 = vmatpush1.msra.mxu0 %v427
  %1981 = vmatprep.subr.mxu0 0.0
  %1982 = vmatpush1.msra.mxu0 %v428
  %1983 = vmatprep.subr.mxu0 0.0
  %1984 = vmatpush1.msra.mxu0 %v429
  %1985 = vmatprep.subr.mxu0 0.0
  %1986 = vmatpush1.msra.mxu0 0.0
  %1987 = vmatprep.subr.mxu0 0.0
  %1988 = vmatpush1.msra.mxu0 0.0
  %1989 = vmatprep.subr.mxu0 0.0
  %1990 = vmatpush1.msra.mxu0 0.0
  %1991 = vmatprep.subr.mxu0 0.0
  %1992 = vmatpush1.msra.mxu0 0.0
  %1993 = vmatprep.subr.mxu0 0.0
  %1994 = vmatpush1.msra.mxu0 0.0
  %1995 = vmatprep.subr.mxu0 0.0
  %1996 = vmatpush1.msra.mxu0 0.0
  %1997 = vmatprep.subr.mxu0 0.0
  %1998 = vmatpush1.msra.mxu0 0.0
  %1999 = vmatprep.subr.mxu0 0.0
  %2000 = vmatpush1.msra.mxu0 0.0
  %2001 = vmatprep.subr.mxu0 0.0
  %2002 = vmatpush1.msra.mxu0 0.0
  %2003 = vmatprep.subr.mxu0 0.0
  %2004 = vmatpush1.msra.mxu0 0.0
  %2005 = vmatprep.subr.mxu0 0.0
  %2006 = vmatpush1.msra.mxu0 0.0
  %2007 = vmatprep.subr.mxu0 0.0
  %2008 = vmatpush1.msra.mxu0 0.0
  %2009 = vmatprep.subr.mxu0 0.0
  %2010 = vmatpush1.msra.mxu0 0.0
  %2011 = vmatprep.subr.mxu0 0.0
  %2012 = vmatpush1.msra.mxu0 0.0
  %2013 = vmatprep.subr.mxu0 0.0
  %2014 = vmatpush1.msra.mxu0 0.0
  %2015 = vmatprep.subr.mxu0 0.0
  %2016 = vmatpush1.msra.mxu0 0.0
  %2017 = vmatprep.subr.mxu0 0.0
  %2018 = vmatpush1.msra.mxu0 0.0
  %2019 = vmatprep.subr.mxu0 0.0
  %2020 = vmatpush1.msra.mxu0 0.0
  %2021 = vmatprep.subr.mxu0 0.0
  %2022 = vmatpush1.msra.mxu0 0.0
  %2023 = vmatprep.subr.mxu0 0.0
  %2024 = vmatpush1.msra.mxu0 0.0
  %2025 = vmatprep.subr.mxu0 0.0
  %2026 = vmatpush1.msra.mxu0 0.0
  %2027 = vmatprep.subr.mxu0 0.0
  %2028 = vmatpush1.msra.mxu0 0.0
  %2029 = vmatprep.subr.mxu0 0.0
  %2030 = vmatpush1.msra.mxu0 0.0
  %2031 = vmatprep.subr.mxu0 0.0
  %2032 = vmatpush1.msra.mxu0 0.0
  %2033 = vmatprep.subr.mxu0 0.0
  %2034 = vmatpush1.msra.mxu0 0.0
  %2035 = vmatprep.subr.mxu0 0.0
  %2036 = vmatpush1.msra.mxu0 0.0
  %2037 = vmatprep.subr.mxu0 0.0
  %2038 = vmatpush1.msra.mxu0 0.0
  %2039 = vmatprep.subr.mxu0 0.0
  %2040 = vmatpush1.msra.mxu0 0.0
  %2041 = vmatprep.mubr.f32.mxu0 0.0
  %2042 = vmatmul.mubr.f32.gmra.mrb[0].mxu0 %v1905
  %v2043 = vpop.f32.mrb[0].mxu0
  %v2044 = vadd.f32 0.0, %v2043
  %v2045 = vpop.f32.mrb[0].mxu0
  %2046 = vdwg.mxu0
  %2047 = vmatprep.subr.mxu0 0.0
  %2048 = vmatpush1.msra.mxu0 %v430
  %2049 = vmatprep.subr.mxu0 0.0
  %2050 = vmatpush1.msra.mxu0 %v431
  %2051 = vmatprep.subr.mxu0 0.0
  %2052 = vmatpush1.msra.mxu0 %v432
  %2053 = vmatprep.subr.mxu0 0.0
  %2054 = vmatpush1.msra.mxu0 %v433
  %2055 = vmatprep.subr.mxu0 0.0
  %2056 = vmatpush1.msra.mxu0 0.0
  %2057 = vmatprep.subr.mxu0 0.0
  %2058 = vmatpush1.msra.mxu0 0.0
  %2059 = vmatprep.subr.mxu0 0.0
  %2060 = vmatpush1.msra.mxu0 0.0
  %2061 = vmatprep.subr.mxu0 0.0
  %2062 = vmatpush1.msra.mxu0 0.0
  %2063 = vmatprep.subr.mxu0 0.0
  %2064 = vmatpush1.msra.mxu0 0.0
  %2065 = vmatprep.subr.mxu0 0.0
  %2066 = vmatpush1.msra.mxu0 0.0
  %2067 = vmatprep.subr.mxu0 0.0
  %2068 = vmatpush1.msra.mxu0 0.0
  %2069 = vmatprep.subr.mxu0 0.0
  %2070 = vmatpush1.msra.mxu0 0.0
  %2071 = vmatprep.subr.mxu0 0.0
  %2072 = vmatpush1.msra.mxu0 0.0
  %2073 = vmatprep.subr.mxu0 0.0
  %2074 = vmatpush1.msra.mxu0 0.0
  %2075 = vmatprep.subr.mxu0 0.0
  %2076 = vmatpush1.msra.mxu0 0.0
  %2077 = vmatprep.subr.mxu0 0.0
  %2078 = vmatpush1.msra.mxu0 0.0
  %2079 = vmatprep.subr.mxu0 0.0
  %2080 = vmatpush1.msra.mxu0 0.0
  %2081 = vmatprep.subr.mxu0 0.0
  %2082 = vmatpush1.msra.mxu0 0.0
  %2083 = vmatprep.subr.mxu0 0.0
  %2084 = vmatpush1.msra.mxu0 0.0
  %2085 = vmatprep.subr.mxu0 0.0
  %2086 = vmatpush1.msra.mxu0 0.0
  %2087 = vmatprep.subr.mxu0 0.0
  %2088 = vmatpush1.msra.mxu0 0.0
  %2089 = vmatprep.subr.mxu0 0.0
  %2090 = vmatpush1.msra.mxu0 0.0
  %2091 = vmatprep.subr.mxu0 0.0
  %2092 = vmatpush1.msra.mxu0 0.0
  %2093 = vmatprep.subr.mxu0 0.0
  %2094 = vmatpush1.msra.mxu0 0.0
  %2095 = vmatprep.subr.mxu0 0.0
  %2096 = vmatpush1.msra.mxu0 0.0
  %2097 = vmatprep.subr.mxu0 0.0
  %2098 = vmatpush1.msra.mxu0 0.0
  %2099 = vmatprep.subr.mxu0 0.0
  %2100 = vmatpush1.msra.mxu0 0.0
  %2101 = vmatprep.subr.mxu0 0.0
  %2102 = vmatpush1.msra.mxu0 0.0
  %2103 = vmatprep.subr.mxu0 0.0
  %2104 = vmatpush1.msra.mxu0 0.0
  %2105 = vmatprep.subr.mxu0 0.0
  %2106 = vmatpush1.msra.mxu0 0.0
  %2107 = vmatprep.subr.mxu0 0.0
  %2108 = vmatpush1.msra.mxu0 0.0
  %2109 = vmatprep.subr.mxu0 0.0
  %2110 = vmatpush1.msra.mxu0 0.0
  %2111 = vmatprep.mubr.f32.mxu0 0.0
  %2112 = vmatmul.mubr.f32.gmra.mrb[0].mxu0 %v1905
  %v2113 = vpop.f32.mrb[0].mxu0
  %v2114 = vadd.f32 %v582, %v2113
  %v2115 = vpop.f32.mrb[0].mxu0
  %2116 = vdwg.mxu0
  %v2118 = vrot.slane %v1974, 4
  %v2120 = vadd.f32 %v239, %v2118
  %v2121 = vxor.u32 %v2120, 2147483648
  %v2122 = vmul.f32 %v2121, 1.442695
  %v2123 = vpow.pop %v2122
  %v2124 = vadd.f32 %v2123, 1.0
  %v2125 = vrcp.pop %v2124
  %v2126 = vmul.f32 1.0, %v2125
  %v2128 = vrot.slane %v2044, 4
  %v2130 = vadd.f32 %v329, %v2128
  %v2131 = vxor.u32 %v2130, 2147483648
  %v2132 = vmul.f32 %v2131, 1.442695
  %v2133 = vpow.pop %v2132
  %v2134 = vadd.f32 %v2133, 1.0
  %v2135 = vrcp.pop %v2134
  %v2136 = vmul.f32 1.0, %v2135
  %v2138 = vrot.slane %v2114, 4
  %v2140 = vmul.f32 %v2126, %v2138
  %v2141 = vadd.f32 %v419, %v2140
  %v2142 = vtanh.pop %v2141
  %v2143 = vsub.f32 1.0, %v2136
  %v2144 = vmul.f32 %v2143, %v2142
  %v2145 = vrot.slane %v1901, 6
  %v2147 = vmul.f32 %v2136, %v2145
  %v2148 = vadd.f32 %v2144, %v2147
  %2149 = vst.msk [vmem:[#allocation2 + $0x8] sm:$0x30] %vm1170, %v2148
  %v2151 = vrot.slane %v2148, 4
  %v2152 = vsel %vm63, %v2151, 0
  %2154 = vmatprep.subr.mxu0 0.0
  %2155 = vmatpush1.msra.mxu0 %v422
  %2156 = vmatprep.subr.mxu0 0.0
  %2157 = vmatpush1.msra.mxu0 %v423
  %2158 = vmatprep.subr.mxu0 0.0
  %2159 = vmatpush1.msra.mxu0 %v424
  %2160 = vmatprep.subr.mxu0 0.0
  %2161 = vmatpush1.msra.mxu0 %v425
  %2162 = vmatprep.subr.mxu0 0.0
  %2163 = vmatpush1.msra.mxu0 0.0
  %2164 = vmatprep.subr.mxu0 0.0
  %2165 = vmatpush1.msra.mxu0 0.0
  %2166 = vmatprep.subr.mxu0 0.0
  %2167 = vmatpush1.msra.mxu0 0.0
  %2168 = vmatprep.subr.mxu0 0.0
  %2169 = vmatpush1.msra.mxu0 0.0
  %2170 = vmatprep.subr.mxu0 0.0
  %2171 = vmatpush1.msra.mxu0 0.0
  %2172 = vmatprep.subr.mxu0 0.0
  %2173 = vmatpush1.msra.mxu0 0.0
  %2174 = vmatprep.subr.mxu0 0.0
  %2175 = vmatpush1.msra.mxu0 0.0
  %2176 = vmatprep.subr.mxu0 0.0
  %2177 = vmatpush1.msra.mxu0 0.0
  %2178 = vmatprep.subr.mxu0 0.0
  %2179 = vmatpush1.msra.mxu0 0.0
  %2180 = vmatprep.subr.mxu0 0.0
  %2181 = vmatpush1.msra.mxu0 0.0
  %2182 = vmatprep.subr.mxu0 0.0
  %2183 = vmatpush1.msra.mxu0 0.0
  %2184 = vmatprep.subr.mxu0 0.0
  %2185 = vmatpush1.msra.mxu0 0.0
  %2186 = vmatprep.subr.mxu0 0.0
  %2187 = vmatpush1.msra.mxu0 0.0
  %2188 = vmatprep.subr.mxu0 0.0
  %2189 = vmatpush1.msra.mxu0 0.0
  %2190 = vmatprep.subr.mxu0 0.0
  %2191 = vmatpush1.msra.mxu0 0.0
  %2192 = vmatprep.subr.mxu0 0.0
  %2193 = vmatpush1.msra.mxu0 0.0
  %2194 = vmatprep.subr.mxu0 0.0
  %2195 = vmatpush1.msra.mxu0 0.0
  %2196 = vmatprep.subr.mxu0 0.0
  %2197 = vmatpush1.msra.mxu0 0.0
  %2198 = vmatprep.subr.mxu0 0.0
  %2199 = vmatpush1.msra.mxu0 0.0
  %2200 = vmatprep.subr.mxu0 0.0
  %2201 = vmatpush1.msra.mxu0 0.0
  %2202 = vmatprep.subr.mxu0 0.0
  %2203 = vmatpush1.msra.mxu0 0.0
  %2204 = vmatprep.subr.mxu0 0.0
  %2205 = vmatpush1.msra.mxu0 0.0
  %2206 = vmatprep.subr.mxu0 0.0
  %2207 = vmatpush1.msra.mxu0 0.0
  %2208 = vmatprep.subr.mxu0 0.0
  %2209 = vmatpush1.msra.mxu0 0.0
  %2210 = vmatprep.subr.mxu0 0.0
  %2211 = vmatpush1.msra.mxu0 0.0
  %2212 = vmatprep.subr.mxu0 0.0
  %2213 = vmatpush1.msra.mxu0 0.0
  %2214 = vmatprep.subr.mxu0 0.0
  %2215 = vmatpush1.msra.mxu0 0.0
  %2216 = vmatprep.subr.mxu0 0.0
  %2217 = vmatpush1.msra.mxu0 0.0
  %2218 = vmatprep.mubr.f32.mxu0 0.0
  %2219 = vmatmul.mubr.f32.gmra.mrb[0].mxu0 %v2152
  %v2220 = vpop.f32.mrb[0].mxu0
  %v2221 = vadd.f32 0.0, %v2220
  %v2222 = vpop.f32.mrb[0].mxu0
  %2223 = vdwg.mxu0
  %2224 = vmatprep.subr.mxu0 0.0
  %2225 = vmatpush1.msra.mxu0 %v426
  %2226 = vmatprep.subr.mxu0 0.0
  %2227 = vmatpush1.msra.mxu0 %v427
  %2228 = vmatprep.subr.mxu0 0.0
  %2229 = vmatpush1.msra.mxu0 %v428
  %2230 = vmatprep.subr.mxu0 0.0
  %2231 = vmatpush1.msra.mxu0 %v429
  %2232 = vmatprep.subr.mxu0 0.0
  %2233 = vmatpush1.msra.mxu0 0.0
  %2234 = vmatprep.subr.mxu0 0.0
  %2235 = vmatpush1.msra.mxu0 0.0
  %2236 = vmatprep.subr.mxu0 0.0
  %2237 = vmatpush1.msra.mxu0 0.0
  %2238 = vmatprep.subr.mxu0 0.0
  %2239 = vmatpush1.msra.mxu0 0.0
  %2240 = vmatprep.subr.mxu0 0.0
  %2241 = vmatpush1.msra.mxu0 0.0
  %2242 = vmatprep.subr.mxu0 0.0
  %2243 = vmatpush1.msra.mxu0 0.0
  %2244 = vmatprep.subr.mxu0 0.0
  %2245 = vmatpush1.msra.mxu0 0.0
  %2246 = vmatprep.subr.mxu0 0.0
  %2247 = vmatpush1.msra.mxu0 0.0
  %2248 = vmatprep.subr.mxu0 0.0
  %2249 = vmatpush1.msra.mxu0 0.0
  %2250 = vmatprep.subr.mxu0 0.0
  %2251 = vmatpush1.msra.mxu0 0.0
  %2252 = vmatprep.subr.mxu0 0.0
  %2253 = vmatpush1.msra.mxu0 0.0
  %2254 = vmatprep.subr.mxu0 0.0
  %2255 = vmatpush1.msra.mxu0 0.0
  %2256 = vmatprep.subr.mxu0 0.0
  %2257 = vmatpush1.msra.mxu0 0.0
  %2258 = vmatprep.subr.mxu0 0.0
  %2259 = vmatpush1.msra.mxu0 0.0
  %2260 = vmatprep.subr.mxu0 0.0
  %2261 = vmatpush1.msra.mxu0 0.0
  %2262 = vmatprep.subr.mxu0 0.0
  %2263 = vmatpush1.msra.mxu0 0.0
  %2264 = vmatprep.subr.mxu0 0.0
  %2265 = vmatpush1.msra.mxu0 0.0
  %2266 = vmatprep.subr.mxu0 0.0
  %2267 = vmatpush1.msra.mxu0 0.0
  %2268 = vmatprep.subr.mxu0 0.0
  %2269 = vmatpush1.msra.mxu0 0.0
  %2270 = vmatprep.subr.mxu0 0.0
  %2271 = vmatpush1.msra.mxu0 0.0
  %2272 = vmatprep.subr.mxu0 0.0
  %2273 = vmatpush1.msra.mxu0 0.0
  %2274 = vmatprep.subr.mxu0 0.0
  %2275 = vmatpush1.msra.mxu0 0.0
  %2276 = vmatprep.subr.mxu0 0.0
  %2277 = vmatpush1.msra.mxu0 0.0
  %2278 = vmatprep.subr.mxu0 0.0
  %2279 = vmatpush1.msra.mxu0 0.0
  %2280 = vmatprep.subr.mxu0 0.0
  %2281 = vmatpush1.msra.mxu0 0.0
  %2282 = vmatprep.subr.mxu0 0.0
  %2283 = vmatpush1.msra.mxu0 0.0
  %2284 = vmatprep.subr.mxu0 0.0
  %2285 = vmatpush1.msra.mxu0 0.0
  %2286 = vmatprep.subr.mxu0 0.0
  %2287 = vmatpush1.msra.mxu0 0.0
  %2288 = vmatprep.mubr.f32.mxu0 0.0
  %2289 = vmatmul.mubr.f32.gmra.mrb[0].mxu0 %v2152
  %v2290 = vpop.f32.mrb[0].mxu0
  %v2291 = vadd.f32 0.0, %v2290
  %v2292 = vpop.f32.mrb[0].mxu0
  %2293 = vdwg.mxu0
  %2294 = vmatprep.subr.mxu0 0.0
  %2295 = vmatpush1.msra.mxu0 %v430
  %2296 = vmatprep.subr.mxu0 0.0
  %2297 = vmatpush1.msra.mxu0 %v431
  %2298 = vmatprep.subr.mxu0 0.0
  %2299 = vmatpush1.msra.mxu0 %v432
  %2300 = vmatprep.subr.mxu0 0.0
  %2301 = vmatpush1.msra.mxu0 %v433
  %2302 = vmatprep.subr.mxu0 0.0
  %2303 = vmatpush1.msra.mxu0 0.0
  %2304 = vmatprep.subr.mxu0 0.0
  %2305 = vmatpush1.msra.mxu0 0.0
  %2306 = vmatprep.subr.mxu0 0.0
  %2307 = vmatpush1.msra.mxu0 0.0
  %2308 = vmatprep.subr.mxu0 0.0
  %2309 = vmatpush1.msra.mxu0 0.0
  %2310 = vmatprep.subr.mxu0 0.0
  %2311 = vmatpush1.msra.mxu0 0.0
  %2312 = vmatprep.subr.mxu0 0.0
  %2313 = vmatpush1.msra.mxu0 0.0
  %2314 = vmatprep.subr.mxu0 0.0
  %2315 = vmatpush1.msra.mxu0 0.0
  %2316 = vmatprep.subr.mxu0 0.0
  %2317 = vmatpush1.msra.mxu0 0.0
  %2318 = vmatprep.subr.mxu0 0.0
  %2319 = vmatpush1.msra.mxu0 0.0
  %2320 = vmatprep.subr.mxu0 0.0
  %2321 = vmatpush1.msra.mxu0 0.0
  %2322 = vmatprep.subr.mxu0 0.0
  %2323 = vmatpush1.msra.mxu0 0.0
  %2324 = vmatprep.subr.mxu0 0.0
  %2325 = vmatpush1.msra.mxu0 0.0
  %2326 = vmatprep.subr.mxu0 0.0
  %2327 = vmatpush1.msra.mxu0 0.0
  %2328 = vmatprep.subr.mxu0 0.0
  %2329 = vmatpush1.msra.mxu0 0.0
  %2330 = vmatprep.subr.mxu0 0.0
  %2331 = vmatpush1.msra.mxu0 0.0
  %2332 = vmatprep.subr.mxu0 0.0
  %2333 = vmatpush1.msra.mxu0 0.0
  %2334 = vmatprep.subr.mxu0 0.0
  %2335 = vmatpush1.msra.mxu0 0.0
  %2336 = vmatprep.subr.mxu0 0.0
  %2337 = vmatpush1.msra.mxu0 0.0
  %2338 = vmatprep.subr.mxu0 0.0
  %2339 = vmatpush1.msra.mxu0 0.0
  %2340 = vmatprep.subr.mxu0 0.0
  %2341 = vmatpush1.msra.mxu0 0.0
  %2342 = vmatprep.subr.mxu0 0.0
  %2343 = vmatpush1.msra.mxu0 0.0
  %2344 = vmatprep.subr.mxu0 0.0
  %2345 = vmatpush1.msra.mxu0 0.0
  %2346 = vmatprep.subr.mxu0 0.0
  %2347 = vmatpush1.msra.mxu0 0.0
  %2348 = vmatprep.subr.mxu0 0.0
  %2349 = vmatpush1.msra.mxu0 0.0
  %2350 = vmatprep.subr.mxu0 0.0
  %2351 = vmatpush1.msra.mxu0 0.0
  %2352 = vmatprep.subr.mxu0 0.0
  %2353 = vmatpush1.msra.mxu0 0.0
  %2354 = vmatprep.subr.mxu0 0.0
  %2355 = vmatpush1.msra.mxu0 0.0
  %2356 = vmatprep.subr.mxu0 0.0
  %2357 = vmatpush1.msra.mxu0 0.0
  %2358 = vmatprep.mubr.f32.mxu0 0.0
  %2359 = vmatmul.mubr.f32.gmra.mrb[0].mxu0 %v2152
  %v2360 = vpop.f32.mrb[0].mxu0
  %v2361 = vadd.f32 %v582, %v2360
  %v2362 = vpop.f32.mrb[0].mxu0
  %2363 = vdwg.mxu0
  %v2365 = vrot.slane %v2221, 2
  %v2367 = vadd.f32 %v239, %v2365
  %v2368 = vxor.u32 %v2367, 2147483648
  %v2369 = vmul.f32 %v2368, 1.442695
  %v2370 = vpow.pop %v2369
  %v2371 = vadd.f32 %v2370, 1.0
  %v2372 = vrcp.pop %v2371
  %v2373 = vmul.f32 1.0, %v2372
  %v2375 = vrot.slane %v2291, 2
  %v2377 = vadd.f32 %v329, %v2375
  %v2378 = vxor.u32 %v2377, 2147483648
  %v2379 = vmul.f32 %v2378, 1.442695
  %v2380 = vpow.pop %v2379
  %v2381 = vadd.f32 %v2380, 1.0
  %v2382 = vrcp.pop %v2381
  %v2383 = vmul.f32 1.0, %v2382
  %v2385 = vrot.slane %v2361, 2
  %v2387 = vmul.f32 %v2373, %v2385
  %v2388 = vadd.f32 %v419, %v2387
  %v2389 = vtanh.pop %v2388
  %v2390 = vsub.f32 1.0, %v2383
  %v2391 = vmul.f32 %v2390, %v2389
  %v2392 = vrot.slane %v2148, 6
  %v2394 = vmul.f32 %v2383, %v2392
  %v2395 = vadd.f32 %v2391, %v2394
  %2396 = vst.msk [vmem:[#allocation2 + $0x8] sm:$0xc0] %vm1418, %v2395
  %v2397 = vld [vmem:[#allocation2] sm:$0xff]
  %v2398 = vld [vmem:[#allocation2 + $0x8] sm:$0xff]
  %v2399 = vld [vmem:[%s13] sm:$0xff]
  %v2400 = vld [vmem:[%s13 + $0x8] sm:$0xff]
  %v2401 = vld [vmem:[%s13 + $0x10] sm:$0xff]
  %v2402 = vld [vmem:[%s13 + $0x18] sm:$0xff]
  %v2403 = vld [vmem:[%s14] sm:$0x1]
  %v2405 = vlaneseq
  %v2406 = vshrl.u32 %v2405, 7
  %v2407 = vsub.s32 0, %v2406
  %v2408 = vrot.slane %v2403, %v2407
  %v2411 = vsel %vm63, %v2397, 0
  %v2414 = vsel %vm63, %v2398, 0
  %2416 = vmatprep.subr.mxu0 0.0
  %2417 = vmatpush1.msra.mxu0 %v2399
  %2418 = vmatprep.subr.mxu0 0.0
  %2419 = vmatpush1.msra.mxu0 %v2400
  %2420 = vmatprep.subr.mxu0 0.0
  %2421 = vmatpush1.msra.mxu0 %v2401
  %2422 = vmatprep.subr.mxu0 0.0
  %2423 = vmatpush1.msra.mxu0 %v2402
  %2424 = vmatprep.subr.mxu0 0.0
  %2425 = vmatpush1.msra.mxu0 0.0
  %2426 = vmatprep.subr.mxu0 0.0
  %2427 = vmatpush1.msra.mxu0 0.0
  %2428 = vmatprep.subr.mxu0 0.0
  %2429 = vmatpush1.msra.mxu0 0.0
  %2430 = vmatprep.subr.mxu0 0.0
  %2431 = vmatpush1.msra.mxu0 0.0
  %2432 = vmatprep.subr.mxu0 0.0
  %2433 = vmatpush1.msra.mxu0 0.0
  %2434 = vmatprep.subr.mxu0 0.0
  %2435 = vmatpush1.msra.mxu0 0.0
  %2436 = vmatprep.subr.mxu0 0.0
  %2437 = vmatpush1.msra.mxu0 0.0
  %2438 = vmatprep.subr.mxu0 0.0
  %2439 = vmatpush1.msra.mxu0 0.0
  %2440 = vmatprep.subr.mxu0 0.0
  %2441 = vmatpush1.msra.mxu0 0.0
  %2442 = vmatprep.subr.mxu0 0.0
  %2443 = vmatpush1.msra.mxu0 0.0
  %2444 = vmatprep.subr.mxu0 0.0
  %2445 = vmatpush1.msra.mxu0 0.0
  %2446 = vmatprep.subr.mxu0 0.0
  %2447 = vmatpush1.msra.mxu0 0.0
  %2448 = vmatprep.subr.mxu0 0.0
  %2449 = vmatpush1.msra.mxu0 0.0
  %2450 = vmatprep.subr.mxu0 0.0
  %2451 = vmatpush1.msra.mxu0 0.0
  %2452 = vmatprep.subr.mxu0 0.0
  %2453 = vmatpush1.msra.mxu0 0.0
  %2454 = vmatprep.subr.mxu0 0.0
  %2455 = vmatpush1.msra.mxu0 0.0
  %2456 = vmatprep.subr.mxu0 0.0
  %2457 = vmatpush1.msra.mxu0 0.0
  %2458 = vmatprep.subr.mxu0 0.0
  %2459 = vmatpush1.msra.mxu0 0.0
  %2460 = vmatprep.subr.mxu0 0.0
  %2461 = vmatpush1.msra.mxu0 0.0
  %2462 = vmatprep.subr.mxu0 0.0
  %2463 = vmatpush1.msra.mxu0 0.0
  %2464 = vmatprep.subr.mxu0 0.0
  %2465 = vmatpush1.msra.mxu0 0.0
  %2466 = vmatprep.subr.mxu0 0.0
  %2467 = vmatpush1.msra.mxu0 0.0
  %2468 = vmatprep.subr.mxu0 0.0
  %2469 = vmatpush1.msra.mxu0 0.0
  %2470 = vmatprep.subr.mxu0 0.0
  %2471 = vmatpush1.msra.mxu0 0.0
  %2472 = vmatprep.subr.mxu0 0.0
  %2473 = vmatpush1.msra.mxu0 0.0
  %2474 = vmatprep.subr.mxu0 0.0
  %2475 = vmatpush1.msra.mxu0 0.0
  %2476 = vmatprep.subr.mxu0 0.0
  %2477 = vmatpush1.msra.mxu0 0.0
  %2478 = vmatprep.subr.mxu0 0.0
  %2479 = vmatpush1.msra.mxu0 0.0
  %2480 = vmatprep.mubr.f32.mxu0 0.0
  %2481 = vmatmul.mubr.f32.gmra.mrb[0].mxu0 %v2411
  %v2482 = vpop.f32.mrb[0].mxu0
  %v2483 = vadd.f32 %v2408, %v2482
  %v2484 = vpop.f32.mrb[0].mxu0
  %2485 = vmatprep.mubr.f32.mxu0 0.0
  %2486 = vmatmul.mubr.f32.gmra.mrb[0].mxu0 %v2414
  %v2487 = vpop.f32.mrb[0].mxu0
  %v2488 = vadd.f32 %v2408, %v2487
  %v2489 = vpop.f32.mrb[0].mxu0
  %2490 = vdwg.mxu0
  %2491 = vst [vmem:[%s15] sm:$0xff] %v2483
  %2492 = vst [vmem:[%s15 + $0x8] sm:$0xff] %v2488
  // Predicated region
  $region62: #{_decoder_forward_impl.1} parent=0 // pred_check
    _
  $region63: #{_decoder_forward_impl.1} parent=0 // pred_check_branch
    %2494 = sbr.rel (0) target = $region65
  $region64: #{_decoder_forward_impl.1} parent=0 // pred_region
    _
  $region65: #{_decoder_forward_impl.1} parent=0 // pred_fallthru
    _
  // Predicated region
  $region66: #{_decoder_forward_impl.1} parent=0 // pred_check
    _
  $region67: #{_decoder_forward_impl.1} parent=0 // pred_check_branch
    %2496 = sbr.rel (0) target = $region69
  $region68: #{_decoder_forward_impl.1} parent=0 // pred_region
    _
  $region69: #{_decoder_forward_impl.1} parent=0 // pred_fallthru
    _

</llo_original>
